<compile_context>
chip_gen: v6e
topology: v6e:2x2x1
jax: 0.10.0
libtpu: 0.0.40
codegen_flags: <defaults>
</compile_context>

<pallas_src>
import jax
import jax.numpy as jnp
from jax.experimental import pallas as pl
from jax.experimental.pallas import tpu as pltpu


def _round_up(x, m):
    return ((x + m - 1) // m) * m


# ----------------------------------------------------------------------------
# Fused Pallas kernel: one GRU layer per grid step, FC head fused on last layer
# ----------------------------------------------------------------------------
def _fused_gru_fc_kernel(x_ref, wih_ref, whh_ref, bx_ref, bhn_ref,
                         wfc_ref, bfc_ref, out_ref, gx_buf, seq_buf):
    """Refs (per grid step l):

    x_ref  : (T, Bp, Hp)  f32   time-major input (resident; same block every step)
    wih_ref: (1, Hp, Gp)  bf16  this layer's input weights (gate-slab layout)
    whh_ref: (1, Hp, Gp)  bf16  this layer's recurrent weights
    bx_ref : (1, 1, Gp)   f32   folded bias (b_ih + b_hh for r,z ; b_ih for n)
    bhn_ref: (1, 1, Hp)   f32   recurrent n-gate bias (b_hh_n)
    wfc_ref: (Hp, Hp)     bf16  FC weight (padded), bfc_ref: (1, Hp) f32
    out_ref: (Bp, Hp)     f32   FC output (padded, resident across layers)
    gx_buf : (T, Bp, Gp)  f32   scratch — precomputed input projections
    seq_buf: (T, Bp, Hp)  f32   scratch — hidden sequence fed to the next layer
    """
    T, Bp, Hp = seq_buf.shape
    Gp = gx_buf.shape[-1]
    l = pl.program_id(0)

    # Layer 0 reads the external input; later layers read the previous layer's
    # hidden sequence. Copy x into seq_buf once so the projection source is uniform.
    @pl.when(l == 0)
    def _():
        seq_buf[...] = x_ref[...]

    wih = wih_ref[0]                                    # (Hp, Gp) bf16
    whh = whh_ref[0]                                    # (Hp, Gp) bf16
    bx = bx_ref[0]                                      # (1, Gp)  f32
    bhn = jnp.broadcast_to(bhn_ref[0], (Bp, Hp))        # hoisted broadcast

    # ---- input projection for the WHOLE sequence (hoisted out of recurrence) ----
    x_all = seq_buf[...].reshape(T * Bp, Hp).astype(jnp.bfloat16)
    gx_buf[...] = (
        jnp.dot(x_all, wih, preferred_element_type=jnp.float32) + bx
    ).reshape(T, Bp, Gp)

    # ---- recurrence: fully unrolled (T small & static) ----
    h = jnp.zeros((Bp, Hp), jnp.float32)
    for t in range(T):
        gx = gx_buf[t]                                  # (Bp, Gp)
        if t == 0:
            # h0 == 0  =>  gh == 0: skip the recurrent matmul entirely
            r = jax.nn.sigmoid(gx[:, 0:Hp])
            z = jax.nn.sigmoid(gx[:, Hp:2 * Hp])
            n = jnp.tanh(gx[:, 2 * Hp:3 * Hp] + r * bhn)
            h = (1.0 - z) * n
        else:
            gh = jnp.dot(h.astype(jnp.bfloat16), whh,
                         preferred_element_type=jnp.float32)        # (Bp, Gp)
            # lane-aligned gate slabs (multiples of 128) -> free slices
            r = jax.nn.sigmoid(gx[:, 0:Hp] + gh[:, 0:Hp])
            z = jax.nn.sigmoid(gx[:, Hp:2 * Hp] + gh[:, Hp:2 * Hp])
            n = jnp.tanh(gx[:, 2 * Hp:3 * Hp] + r * (gh[:, 2 * Hp:3 * Hp] + bhn))
            h = (1.0 - z) * n + z * h
        seq_buf[t] = h                                  # next layer's input

    # ---- fused FC head on this layer's final hidden state ----
    # Cheap (8x128 @ 128x128); written every layer, last write wins since the
    # output block stays resident across the whole (sequential) layer grid.
    out_ref[...] = (
        jnp.dot(h.astype(jnp.bfloat16), wfc_ref[...],
                preferred_element_type=jnp.float32) + bfc_ref[...]
    ).astype(out_ref.dtype)


# ----------------------------------------------------------------------------
# Parameter init (PyTorch-style) and one-time kernel-layout preparation
# ----------------------------------------------------------------------------
def init_params(key, input_size, hidden_size, output_size, num_layers):
    """Deterministic init mimicking PyTorch's uniform(-1/sqrt(H), 1/sqrt(H))."""
    k = 1.0 / jnp.sqrt(hidden_size)
    params = {"gru": [], "fc": None}
    for layer in range(num_layers):
        d_in = input_size if layer == 0 else hidden_size
        key, k1, k2, k3, k4 = jax.random.split(key, 5)
        params["gru"].append(dict(
            w_ih=jax.random.uniform(k1, (3 * hidden_size, d_in), jnp.float32, -k, k),
            w_hh=jax.random.uniform(k2, (3 * hidden_size, hidden_size), jnp.float32, -k, k),
            b_ih=jax.random.uniform(k3, (3 * hidden_size,), jnp.float32, -k, k),
            b_hh=jax.random.uniform(k4, (3 * hidden_size,), jnp.float32, -k, k),
        ))
    key, k1, k2 = jax.random.split(key, 3)
    params["fc"] = dict(
        w=jax.random.uniform(k1, (output_size, hidden_size), jnp.float32, -k, k),
        b=jax.random.uniform(k2, (output_size,), jnp.float32, -k, k),
    )
    return params


def prepare_params(params, input_size, hidden_size):
    """Transpose / pad / fold PyTorch-layout weights into kernel layout (done once)."""
    H = hidden_size
    Hp = max(_round_up(H, 128), 128)
    Gp = 3 * Hp

    def gate_pad_mat(w, rows):
        # w: (3H, rows) PyTorch layout -> (Hp, Gp): each gate in its own 128-lane slab
        wt = w.T  # (rows, 3H), gate order r|z|n
        blocks = [jnp.pad(wt[:, g * H:(g + 1) * H], ((0, Hp - rows), (0, Hp - H)))
                  for g in range(3)]
        return jnp.concatenate(blocks, axis=1)

    wih_all, whh_all, bx_all, bhn_all = [], [], [], []
    for l, lp in enumerate(params["gru"]):
        d_in = input_size if l == 0 else H
        b_ih, b_hh = lp["b_ih"], lp["b_hh"]
        wih_all.append(gate_pad_mat(lp["w_ih"], d_in))
        whh_all.append(gate_pad_mat(lp["w_hh"], H))
        # fold b_hh_r, b_hh_z into the input-side bias; n keeps b_ih only
        bx = jnp.concatenate([
            jnp.pad(b_ih[0:H] + b_hh[0:H], (0, Hp - H)),
            jnp.pad(b_ih[H:2 * H] + b_hh[H:2 * H], (0, Hp - H)),
            jnp.pad(b_ih[2 * H:3 * H], (0, Hp - H)),
        ]).reshape(1, Gp)
        bx_all.append(bx)
        bhn_all.append(jnp.pad(b_hh[2 * H:3 * H], (0, Hp - H)).reshape(1, Hp))

    O = params["fc"]["w"].shape[0]
    wfc = jnp.pad(params["fc"]["w"].T, ((0, Hp - H), (0, Hp - O)))
    bfc = jnp.pad(params["fc"]["b"], (0, Hp - O)).reshape(1, Hp)

    return dict(
        # bf16 MXU operands (f32 accumulate in-kernel); biases stay f32
        wih=jnp.stack(wih_all).astype(jnp.bfloat16),
        whh=jnp.stack(whh_all).astype(jnp.bfloat16),
        bx=jnp.stack(bx_all).astype(jnp.float32),
        bhn=jnp.stack(bhn_all).astype(jnp.float32),
        wfc=wfc.astype(jnp.bfloat16),
        bfc=bfc.astype(jnp.float32),
        H=H, Hp=Hp, O=O,
    )


# ----------------------------------------------------------------------------
# Forward: single fused pallas_call with grid over layers
# ----------------------------------------------------------------------------
def gru_model_forward(kp, x):
    """x: (batch, seq, input_size) -> (batch, output_size).

    Matches nn.GRU(batch_first=True, num_layers=L) with h0 = zeros, then
    fc(out[:, -1, :]).
    """
    B, T, D = x.shape
    Hp, Gp = kp["Hp"], 3 * kp["Hp"]
    L = kp["wih"].shape[0]
    Bp = max(8, _round_up(B, 8))

    # time-major + pad batch to 8 sublanes, features to 128 lanes (zeros)
    x_tm = jnp.transpose(x, (1, 0, 2)).astype(jnp.float32)
    x_pad = jnp.pad(x_tm, ((0, 0), (0, Bp - B), (0, Hp - D)))

    out_pad = pl.pallas_call(
        _fused_gru_fc_kernel,
        grid=(L,),
        in_specs=[
            pl.BlockSpec((T, Bp, Hp), lambda l: (0, 0, 0)),   # x (resident)
            pl.BlockSpec((1, Hp, Gp), lambda l: (l, 0, 0)),   # wih[l] (streamed)
            pl.BlockSpec((1, Hp, Gp), lambda l: (l, 0, 0)),   # whh[l] (streamed)
            pl.BlockSpec((1, 1, Gp), lambda l: (l, 0, 0)),    # bx[l]
            pl.BlockSpec((1, 1, Hp), lambda l: (l, 0, 0)),    # bhn[l]
            pl.BlockSpec((Hp, Hp), lambda l: (0, 0)),         # wfc (resident)
            pl.BlockSpec((1, Hp), lambda l: (0, 0)),          # bfc (resident)
        ],
        out_specs=pl.BlockSpec((Bp, Hp), lambda l: (0, 0)),
        out_shape=jax.ShapeDtypeStruct((Bp, Hp), jnp.float32),
        scratch_shapes=[
            pltpu.VMEM((T, Bp, Gp), jnp.float32),   # precomputed input projections
            pltpu.VMEM((T, Bp, Hp), jnp.float32),   # hidden sequence for next layer
        ],
        compiler_params=pltpu.CompilerParams(
            dimension_semantics=("arbitrary",)),    # layers are sequentially dependent
    )(x_pad, kp["wih"], kp["whh"], kp["bx"], kp["bhn"], kp["wfc"], kp["bfc"])

    return out_pad[:B, :kp["O"]]


# ----------------------------------------------------------------------------
# Pure-JAX reference (f32, for correctness check only)
# ----------------------------------------------------------------------------
def gru_model_reference(params, x):
    B, T, _ = x.shape
    H = params["gru"][0]["w_hh"].shape[1]
    seq = x
    for lp in params["gru"]:
        h = jnp.zeros((B, H), jnp.float32)
        outs = []
        for t in range(T):
            gx = seq[:, t, :] @ lp["w_ih"].T + lp["b_ih"]
            gh = h @ lp["w_hh"].T + lp["b_hh"]
            r = jax.nn.sigmoid(gx[:, :H] + gh[:, :H])
            z = jax.nn.sigmoid(gx[:, H:2 * H] + gh[:, H:2 * H])
            n = jnp.tanh(gx[:, 2 * H:] + r * gh[:, 2 * H:])
            h = (1.0 - z) * n + z * h
            outs.append(h)
        seq = jnp.stack(outs, axis=1)
    return seq[:, -1, :] @ params["fc"]["w"].T + params["fc"]["b"]


# ----------------------------------------------------------------------------
if __name__ == "__main__":
    input_size = 1
    hidden_size = 90
    output_size = 1
    num_layers = 4
    batch = 2
    seq_len = 8

    key = jax.random.PRNGKey(0)
    key, pkey, xkey = jax.random.split(key, 3)
    params = init_params(pkey, input_size, hidden_size, output_size, num_layers)
    kparams = prepare_params(params, input_size, hidden_size)
    x = jax.random.normal(xkey, (batch, seq_len, input_size), jnp.float32)

    out = jax.block_until_ready(gru_model_forward(kparams, x))
    ref = jax.block_until_ready(gru_model_reference(params, x))

    assert out.shape == (batch, output_size), out.shape
    # bf16 MXU operands (f32 accumulate) -> relaxed tolerance vs f32 reference
    assert jnp.allclose(out, ref, rtol=5e-2, atol=5e-2), (out, ref)
    print("KERNEL_OK")
</pallas_src>

<mosaic_0001>
module attributes {stable_mosaic.version = 11 : i64} {
  func.func @_fused_gru_fc_kernel(%arg0: i32, %arg1: memref<8x8x128xf32, #tpu.memory_space<vmem>>, %arg2: memref<1x128x384xbf16, #tpu.memory_space<vmem>>, %arg3: memref<1x128x384xbf16, #tpu.memory_space<vmem>>, %arg4: memref<1x1x384xf32, #tpu.memory_space<vmem>>, %arg5: memref<1x1x128xf32, #tpu.memory_space<vmem>>, %arg6: memref<128x128xbf16, #tpu.memory_space<vmem>>, %arg7: memref<1x128xf32, #tpu.memory_space<vmem>>, %arg8: memref<8x128xf32, #tpu.memory_space<vmem>>, %arg9: memref<8x8x384xf32, #tpu.memory_space<vmem>>, %arg10: memref<8x8x128xf32, #tpu.memory_space<vmem>>) attributes {dimension_semantics = [#tpu.dimension_semantics<arbitrary>], iteration_bounds = array<i64: 4>, scalar_prefetch = 0 : i64, scratch_operands = 2 : i64, tpu.core_type = #tpu.core_type<tc>, window_params = [{pipeline_mode = #tpu.pipeline_mode<synchronous>, transform_indices = @transform_0, window_bounds = array<i64: 8, 8, 128>}, {transform_indices = @transform_1, window_bounds = array<i64: 1, 128, 384>}, {transform_indices = @transform_2, window_bounds = array<i64: 1, 128, 384>}, {transform_indices = @transform_3, window_bounds = array<i64: 1, 1, 384>}, {transform_indices = @transform_4, window_bounds = array<i64: 1, 1, 128>}, {pipeline_mode = #tpu.pipeline_mode<synchronous>, transform_indices = @transform_5, window_bounds = array<i64: 128, 128>}, {pipeline_mode = #tpu.pipeline_mode<synchronous>, transform_indices = @transform_6, window_bounds = array<i64: 1, 128>}, {pipeline_mode = #tpu.pipeline_mode<synchronous>, transform_indices = @transform_7, window_bounds = array<i64: 8, 128>}]} {
    %c0_i32 = arith.constant 0 : i32
    %0 = arith.cmpi eq, %arg0, %c0_i32 : i32
    %1 = arith.extui %0 : i1 to i32
    %c0_i32_0 = arith.constant 0 : i32
    %2 = arith.cmpi ne, %1, %c0_i32_0 : i32
    scf.if %2 {
      %c0_97 = arith.constant 0 : index
      %c0_98 = arith.constant 0 : index
      %c0_99 = arith.constant 0 : index
      %290 = vector.load %arg1[%c0_97, %c0_98, %c0_99] : memref<8x8x128xf32, #tpu.memory_space<vmem>>, vector<8x8x128xf32>
      %c0_100 = arith.constant 0 : index
      %c0_101 = arith.constant 0 : index
      %c0_102 = arith.constant 0 : index
      %291 = vector.load %arg10[%c0_100, %c0_101, %c0_102] : memref<8x8x128xf32, #tpu.memory_space<vmem>>, vector<8x8x128xf32>
      tpu.vector_store %arg10[%c0_100, %c0_101, %c0_102], %290 {strides = array<i32>} : memref<8x8x128xf32, #tpu.memory_space<vmem>>, vector<8x8x128xf32>,
    } else {
    }
    %c0 = arith.constant 0 : index
    %c0_1 = arith.constant 0 : index
    %c0_2 = arith.constant 0 : index
    %3 = vector.load %arg2[%c0, %c0_1, %c0_2] : memref<1x128x384xbf16, #tpu.memory_space<vmem>>, vector<1x128x384xbf16>
    %4 = vector.shape_cast %3 : vector<1x128x384xbf16> to vector<128x384xbf16>
    %c0_3 = arith.constant 0 : index
    %c0_4 = arith.constant 0 : index
    %c0_5 = arith.constant 0 : index
    %5 = vector.load %arg3[%c0_3, %c0_4, %c0_5] : memref<1x128x384xbf16, #tpu.memory_space<vmem>>, vector<1x128x384xbf16>
    %6 = vector.shape_cast %5 : vector<1x128x384xbf16> to vector<128x384xbf16>
    %c0_6 = arith.constant 0 : index
    %c0_7 = arith.constant 0 : index
    %c0_8 = arith.constant 0 : index
    %7 = vector.load %arg4[%c0_6, %c0_7, %c0_8] : memref<1x1x384xf32, #tpu.memory_space<vmem>>, vector<1x1x384xf32>
    %8 = vector.shape_cast %7 : vector<1x1x384xf32> to vector<1x384xf32>
    %c0_9 = arith.constant 0 : index
    %c0_10 = arith.constant 0 : index
    %c0_11 = arith.constant 0 : index
    %9 = vector.load %arg5[%c0_9, %c0_10, %c0_11] : memref<1x1x128xf32, #tpu.memory_space<vmem>>, vector<1x1x128xf32>
    %10 = vector.shape_cast %9 : vector<1x1x128xf32> to vector<1x128xf32>
    %11 = vector.shape_cast %10 : vector<1x128xf32> to vector<1x128xf32>
    %12 = vector.broadcast %11 : vector<1x128xf32> to vector<8x128xf32>
    %c0_12 = arith.constant 0 : index
    %c0_13 = arith.constant 0 : index
    %c0_14 = arith.constant 0 : index
    %13 = vector.load %arg10[%c0_12, %c0_13, %c0_14] : memref<8x8x128xf32, #tpu.memory_space<vmem>>, vector<8x8x128xf32>
    %14 = vector.shape_cast %13 : vector<8x8x128xf32> to vector<64x128xf32>
    %15 = arith.truncf %14 : vector<64x128xf32> to vector<64x128xbf16>
    %cst = arith.constant dense<0.000000e+00> : vector<64x384xf32>
    %16 = tpu.matmul %15, %4, %cst {dimension_numbers = #tpu.dot_dimension_numbers<[1], [0], [0], [1], [0, 0, 1, 1], [], []>} : vector<64x128xbf16>, vector<128x384xbf16>, vector<64x384xf32> -> vector<64x384xf32>
    %17 = vector.broadcast %8 : vector<1x384xf32> to vector<64x384xf32>
    %18 = arith.addf %16, %17 : vector<64x384xf32>
    %19 = vector.shape_cast %18 : vector<64x384xf32> to vector<8x8x384xf32>
    %c0_15 = arith.constant 0 : index
    %c0_16 = arith.constant 0 : index
    %c0_17 = arith.constant 0 : index
    %20 = vector.load %arg9[%c0_15, %c0_16, %c0_17] : memref<8x8x384xf32, #tpu.memory_space<vmem>>, vector<8x8x384xf32>
    tpu.vector_store %arg9[%c0_15, %c0_16, %c0_17], %19 {strides = array<i32>} : memref<8x8x384xf32, #tpu.memory_space<vmem>>, vector<8x8x384xf32>,
    %c0_18 = arith.constant 0 : index
    %c0_19 = arith.constant 0 : index
    %c0_20 = arith.constant 0 : index
    %21 = vector.load %arg9[%c0_18, %c0_19, %c0_20] : memref<8x8x384xf32, #tpu.memory_space<vmem>>, vector<1x8x384xf32>
    %22 = vector.shape_cast %21 : vector<1x8x384xf32> to vector<8x384xf32>
    %23 = vector.extract_strided_slice %22 {offsets = [0, 0], sizes = [8, 128], strides = [1, 1]} : vector<8x384xf32> to vector<8x128xf32>
    %24 = arith.negf %23 : vector<8x128xf32>
    %25 = math.exp %24 : vector<8x128xf32>
    %cst_21 = arith.constant 1.000000e+00 : f32
    %26 = vector.broadcast %cst_21 : f32 to vector<8x128xf32>
    %27 = arith.addf %26, %25 : vector<8x128xf32>
    %28 = arith.divf %26, %27 : vector<8x128xf32>
    %29 = vector.extract_strided_slice %22 {offsets = [0, 128], sizes = [8, 128], strides = [1, 1]} : vector<8x384xf32> to vector<8x128xf32>
    %30 = arith.negf %29 : vector<8x128xf32>
    %31 = math.exp %30 : vector<8x128xf32>
    %cst_22 = arith.constant 1.000000e+00 : f32
    %32 = vector.broadcast %cst_22 : f32 to vector<8x128xf32>
    %33 = arith.addf %32, %31 : vector<8x128xf32>
    %34 = arith.divf %32, %33 : vector<8x128xf32>
    %35 = vector.extract_strided_slice %22 {offsets = [0, 256], sizes = [8, 128], strides = [1, 1]} : vector<8x384xf32> to vector<8x128xf32>
    %36 = arith.mulf %28, %12 : vector<8x128xf32>
    %37 = arith.addf %35, %36 : vector<8x128xf32>
    %38 = math.tanh %37 : vector<8x128xf32>
    %cst_23 = arith.constant 1.000000e+00 : f32
    %39 = vector.broadcast %cst_23 : f32 to vector<8x128xf32>
    %40 = arith.subf %39, %34 : vector<8x128xf32>
    %41 = arith.mulf %40, %38 : vector<8x128xf32>
    %c0_24 = arith.constant 0 : index
    %c0_25 = arith.constant 0 : index
    %c0_26 = arith.constant 0 : index
    %42 = vector.load %arg10[%c0_24, %c0_25, %c0_26] : memref<8x8x128xf32, #tpu.memory_space<vmem>>, vector<1x8x128xf32>
    %43 = vector.shape_cast %42 : vector<1x8x128xf32> to vector<8x128xf32>
    %44 = vector.shape_cast %41 : vector<8x128xf32> to vector<1x8x128xf32>
    tpu.vector_store %arg10[%c0_24, %c0_25, %c0_26], %44 {strides = array<i32>} : memref<8x8x128xf32, #tpu.memory_space<vmem>>, vector<1x8x128xf32>,
    %c1 = arith.constant 1 : index
    %c0_27 = arith.constant 0 : index
    %c0_28 = arith.constant 0 : index
    %45 = vector.load %arg9[%c1, %c0_27, %c0_28] : memref<8x8x384xf32, #tpu.memory_space<vmem>>, vector<1x8x384xf32>
    %46 = vector.shape_cast %45 : vector<1x8x384xf32> to vector<8x384xf32>
    %47 = arith.truncf %41 : vector<8x128xf32> to vector<8x128xbf16>
    %cst_29 = arith.constant dense<0.000000e+00> : vector<8x384xf32>
    %48 = tpu.matmul %47, %6, %cst_29 {dimension_numbers = #tpu.dot_dimension_numbers<[1], [0], [0], [1], [0, 0, 1, 1], [], []>} : vector<8x128xbf16>, vector<128x384xbf16>, vector<8x384xf32> -> vector<8x384xf32>
    %49 = vector.extract_strided_slice %46 {offsets = [0, 0], sizes = [8, 128], strides = [1, 1]} : vector<8x384xf32> to vector<8x128xf32>
    %50 = vector.extract_strided_slice %48 {offsets = [0, 0], sizes = [8, 128], strides = [1, 1]} : vector<8x384xf32> to vector<8x128xf32>
    %51 = arith.addf %49, %50 : vector<8x128xf32>
    %52 = arith.negf %51 : vector<8x128xf32>
    %53 = math.exp %52 : vector<8x128xf32>
    %cst_30 = arith.constant 1.000000e+00 : f32
    %54 = vector.broadcast %cst_30 : f32 to vector<8x128xf32>
    %55 = arith.addf %54, %53 : vector<8x128xf32>
    %56 = arith.divf %54, %55 : vector<8x128xf32>
    %57 = vector.extract_strided_slice %46 {offsets = [0, 128], sizes = [8, 128], strides = [1, 1]} : vector<8x384xf32> to vector<8x128xf32>
    %58 = vector.extract_strided_slice %48 {offsets = [0, 128], sizes = [8, 128], strides = [1, 1]} : vector<8x384xf32> to vector<8x128xf32>
    %59 = arith.addf %57, %58 : vector<8x128xf32>
    %60 = arith.negf %59 : vector<8x128xf32>
    %61 = math.exp %60 : vector<8x128xf32>
    %cst_31 = arith.constant 1.000000e+00 : f32
    %62 = vector.broadcast %cst_31 : f32 to vector<8x128xf32>
    %63 = arith.addf %62, %61 : vector<8x128xf32>
    %64 = arith.divf %62, %63 : vector<8x128xf32>
    %65 = vector.extract_strided_slice %46 {offsets = [0, 256], sizes = [8, 128], strides = [1, 1]} : vector<8x384xf32> to vector<8x128xf32>
    %66 = vector.extract_strided_slice %48 {offsets = [0, 256], sizes = [8, 128], strides = [1, 1]} : vector<8x384xf32> to vector<8x128xf32>
    %67 = arith.addf %66, %12 : vector<8x128xf32>
    %68 = arith.mulf %56, %67 : vector<8x128xf32>
    %69 = arith.addf %65, %68 : vector<8x128xf32>
    %70 = math.tanh %69 : vector<8x128xf32>
    %cst_32 = arith.constant 1.000000e+00 : f32
    %71 = vector.broadcast %cst_32 : f32 to vector<8x128xf32>
    %72 = arith.subf %71, %64 : vector<8x128xf32>
    %73 = arith.mulf %72, %70 : vector<8x128xf32>
    %74 = arith.mulf %64, %41 : vector<8x128xf32>
    %75 = arith.addf %73, %74 : vector<8x128xf32>
    %c1_33 = arith.constant 1 : index
    %c0_34 = arith.constant 0 : index
    %c0_35 = arith.constant 0 : index
    %76 = vector.load %arg10[%c1_33, %c0_34, %c0_35] : memref<8x8x128xf32, #tpu.memory_space<vmem>>, vector<1x8x128xf32>
    %77 = vector.shape_cast %76 : vector<1x8x128xf32> to vector<8x128xf32>
    %78 = vector.shape_cast %75 : vector<8x128xf32> to vector<1x8x128xf32>
    tpu.vector_store %arg10[%c1_33, %c0_34, %c0_35], %78 {strides = array<i32>} : memref<8x8x128xf32, #tpu.memory_space<vmem>>, vector<1x8x128xf32>,
    %c2 = arith.constant 2 : index
    %c0_36 = arith.constant 0 : index
    %c0_37 = arith.constant 0 : index
    %79 = vector.load %arg9[%c2, %c0_36, %c0_37] : memref<8x8x384xf32, #tpu.memory_space<vmem>>, vector<1x8x384xf32>
    %80 = vector.shape_cast %79 : vector<1x8x384xf32> to vector<8x384xf32>
    %81 = arith.truncf %75 : vector<8x128xf32> to vector<8x128xbf16>
    %cst_38 = arith.constant dense<0.000000e+00> : vector<8x384xf32>
    %82 = tpu.matmul %81, %6, %cst_38 {dimension_numbers = #tpu.dot_dimension_numbers<[1], [0], [0], [1], [0, 0, 1, 1], [], []>} : vector<8x128xbf16>, vector<128x384xbf16>, vector<8x384xf32> -> vector<8x384xf32>
    %83 = vector.extract_strided_slice %80 {offsets = [0, 0], sizes = [8, 128], strides = [1, 1]} : vector<8x384xf32> to vector<8x128xf32>
    %84 = vector.extract_strided_slice %82 {offsets = [0, 0], sizes = [8, 128], strides = [1, 1]} : vector<8x384xf32> to vector<8x128xf32>
    %85 = arith.addf %83, %84 : vector<8x128xf32>
    %86 = arith.negf %85 : vector<8x128xf32>
    %87 = math.exp %86 : vector<8x128xf32>
    %cst_39 = arith.constant 1.000000e+00 : f32
    %88 = vector.broadcast %cst_39 : f32 to vector<8x128xf32>
    %89 = arith.addf %88, %87 : vector<8x128xf32>
    %90 = arith.divf %88, %89 : vector<8x128xf32>
    %91 = vector.extract_strided_slice %80 {offsets = [0, 128], sizes = [8, 128], strides = [1, 1]} : vector<8x384xf32> to vector<8x128xf32>
    %92 = vector.extract_strided_slice %82 {offsets = [0, 128], sizes = [8, 128], strides = [1, 1]} : vector<8x384xf32> to vector<8x128xf32>
    %93 = arith.addf %91, %92 : vector<8x128xf32>
    %94 = arith.negf %93 : vector<8x128xf32>
    %95 = math.exp %94 : vector<8x128xf32>
    %cst_40 = arith.constant 1.000000e+00 : f32
    %96 = vector.broadcast %cst_40 : f32 to vector<8x128xf32>
    %97 = arith.addf %96, %95 : vector<8x128xf32>
    %98 = arith.divf %96, %97 : vector<8x128xf32>
    %99 = vector.extract_strided_slice %80 {offsets = [0, 256], sizes = [8, 128], strides = [1, 1]} : vector<8x384xf32> to vector<8x128xf32>
    %100 = vector.extract_strided_slice %82 {offsets = [0, 256], sizes = [8, 128], strides = [1, 1]} : vector<8x384xf32> to vector<8x128xf32>
    %101 = arith.addf %100, %12 : vector<8x128xf32>
    %102 = arith.mulf %90, %101 : vector<8x128xf32>
    %103 = arith.addf %99, %102 : vector<8x128xf32>
    %104 = math.tanh %103 : vector<8x128xf32>
    %cst_41 = arith.constant 1.000000e+00 : f32
    %105 = vector.broadcast %cst_41 : f32 to vector<8x128xf32>
    %106 = arith.subf %105, %98 : vector<8x128xf32>
    %107 = arith.mulf %106, %104 : vector<8x128xf32>
    %108 = arith.mulf %98, %75 : vector<8x128xf32>
    %109 = arith.addf %107, %108 : vector<8x128xf32>
    %c2_42 = arith.constant 2 : index
    %c0_43 = arith.constant 0 : index
    %c0_44 = arith.constant 0 : index
    %110 = vector.load %arg10[%c2_42, %c0_43, %c0_44] : memref<8x8x128xf32, #tpu.memory_space<vmem>>, vector<1x8x128xf32>
    %111 = vector.shape_cast %110 : vector<1x8x128xf32> to vector<8x128xf32>
    %112 = vector.shape_cast %109 : vector<8x128xf32> to vector<1x8x128xf32>
    tpu.vector_store %arg10[%c2_42, %c0_43, %c0_44], %112 {strides = array<i32>} : memref<8x8x128xf32, #tpu.memory_space<vmem>>, vector<1x8x128xf32>,
    %c3 = arith.constant 3 : index
    %c0_45 = arith.constant 0 : index
    %c0_46 = arith.constant 0 : index
    %113 = vector.load %arg9[%c3, %c0_45, %c0_46] : memref<8x8x384xf32, #tpu.memory_space<vmem>>, vector<1x8x384xf32>
    %114 = vector.shape_cast %113 : vector<1x8x384xf32> to vector<8x384xf32>
    %115 = arith.truncf %109 : vector<8x128xf32> to vector<8x128xbf16>
    %cst_47 = arith.constant dense<0.000000e+00> : vector<8x384xf32>
    %116 = tpu.matmul %115, %6, %cst_47 {dimension_numbers = #tpu.dot_dimension_numbers<[1], [0], [0], [1], [0, 0, 1, 1], [], []>} : vector<8x128xbf16>, vector<128x384xbf16>, vector<8x384xf32> -> vector<8x384xf32>
    %117 = vector.extract_strided_slice %114 {offsets = [0, 0], sizes = [8, 128], strides = [1, 1]} : vector<8x384xf32> to vector<8x128xf32>
    %118 = vector.extract_strided_slice %116 {offsets = [0, 0], sizes = [8, 128], strides = [1, 1]} : vector<8x384xf32> to vector<8x128xf32>
    %119 = arith.addf %117, %118 : vector<8x128xf32>
    %120 = arith.negf %119 : vector<8x128xf32>
    %121 = math.exp %120 : vector<8x128xf32>
    %cst_48 = arith.constant 1.000000e+00 : f32
    %122 = vector.broadcast %cst_48 : f32 to vector<8x128xf32>
    %123 = arith.addf %122, %121 : vector<8x128xf32>
    %124 = arith.divf %122, %123 : vector<8x128xf32>
    %125 = vector.extract_strided_slice %114 {offsets = [0, 128], sizes = [8, 128], strides = [1, 1]} : vector<8x384xf32> to vector<8x128xf32>
    %126 = vector.extract_strided_slice %116 {offsets = [0, 128], sizes = [8, 128], strides = [1, 1]} : vector<8x384xf32> to vector<8x128xf32>
    %127 = arith.addf %125, %126 : vector<8x128xf32>
    %128 = arith.negf %127 : vector<8x128xf32>
    %129 = math.exp %128 : vector<8x128xf32>
    %cst_49 = arith.constant 1.000000e+00 : f32
    %130 = vector.broadcast %cst_49 : f32 to vector<8x128xf32>
    %131 = arith.addf %130, %129 : vector<8x128xf32>
    %132 = arith.divf %130, %131 : vector<8x128xf32>
    %133 = vector.extract_strided_slice %114 {offsets = [0, 256], sizes = [8, 128], strides = [1, 1]} : vector<8x384xf32> to vector<8x128xf32>
    %134 = vector.extract_strided_slice %116 {offsets = [0, 256], sizes = [8, 128], strides = [1, 1]} : vector<8x384xf32> to vector<8x128xf32>
    %135 = arith.addf %134, %12 : vector<8x128xf32>
    %136 = arith.mulf %124, %135 : vector<8x128xf32>
    %137 = arith.addf %133, %136 : vector<8x128xf32>
    %138 = math.tanh %137 : vector<8x128xf32>
    %cst_50 = arith.constant 1.000000e+00 : f32
    %139 = vector.broadcast %cst_50 : f32 to vector<8x128xf32>
    %140 = arith.subf %139, %132 : vector<8x128xf32>
    %141 = arith.mulf %140, %138 : vector<8x128xf32>
    %142 = arith.mulf %132, %109 : vector<8x128xf32>
    %143 = arith.addf %141, %142 : vector<8x128xf32>
    %c3_51 = arith.constant 3 : index
    %c0_52 = arith.constant 0 : index
    %c0_53 = arith.constant 0 : index
    %144 = vector.load %arg10[%c3_51, %c0_52, %c0_53] : memref<8x8x128xf32, #tpu.memory_space<vmem>>, vector<1x8x128xf32>
    %145 = vector.shape_cast %144 : vector<1x8x128xf32> to vector<8x128xf32>
    %146 = vector.shape_cast %143 : vector<8x128xf32> to vector<1x8x128xf32>
    tpu.vector_store %arg10[%c3_51, %c0_52, %c0_53], %146 {strides = array<i32>} : memref<8x8x128xf32, #tpu.memory_space<vmem>>, vector<1x8x128xf32>,
    %c4 = arith.constant 4 : index
    %c0_54 = arith.constant 0 : index
    %c0_55 = arith.constant 0 : index
    %147 = vector.load %arg9[%c4, %c0_54, %c0_55] : memref<8x8x384xf32, #tpu.memory_space<vmem>>, vector<1x8x384xf32>
    %148 = vector.shape_cast %147 : vector<1x8x384xf32> to vector<8x384xf32>
    %149 = arith.truncf %143 : vector<8x128xf32> to vector<8x128xbf16>
    %cst_56 = arith.constant dense<0.000000e+00> : vector<8x384xf32>
    %150 = tpu.matmul %149, %6, %cst_56 {dimension_numbers = #tpu.dot_dimension_numbers<[1], [0], [0], [1], [0, 0, 1, 1], [], []>} : vector<8x128xbf16>, vector<128x384xbf16>, vector<8x384xf32> -> vector<8x384xf32>
    %151 = vector.extract_strided_slice %148 {offsets = [0, 0], sizes = [8, 128], strides = [1, 1]} : vector<8x384xf32> to vector<8x128xf32>
    %152 = vector.extract_strided_slice %150 {offsets = [0, 0], sizes = [8, 128], strides = [1, 1]} : vector<8x384xf32> to vector<8x128xf32>
    %153 = arith.addf %151, %152 : vector<8x128xf32>
    %154 = arith.negf %153 : vector<8x128xf32>
    %155 = math.exp %154 : vector<8x128xf32>
    %cst_57 = arith.constant 1.000000e+00 : f32
    %156 = vector.broadcast %cst_57 : f32 to vector<8x128xf32>
    %157 = arith.addf %156, %155 : vector<8x128xf32>
    %158 = arith.divf %156, %157 : vector<8x128xf32>
    %159 = vector.extract_strided_slice %148 {offsets = [0, 128], sizes = [8, 128], strides = [1, 1]} : vector<8x384xf32> to vector<8x128xf32>
    %160 = vector.extract_strided_slice %150 {offsets = [0, 128], sizes = [8, 128], strides = [1, 1]} : vector<8x384xf32> to vector<8x128xf32>
    %161 = arith.addf %159, %160 : vector<8x128xf32>
    %162 = arith.negf %161 : vector<8x128xf32>
    %163 = math.exp %162 : vector<8x128xf32>
    %cst_58 = arith.constant 1.000000e+00 : f32
    %164 = vector.broadcast %cst_58 : f32 to vector<8x128xf32>
    %165 = arith.addf %164, %163 : vector<8x128xf32>
    %166 = arith.divf %164, %165 : vector<8x128xf32>
    %167 = vector.extract_strided_slice %148 {offsets = [0, 256], sizes = [8, 128], strides = [1, 1]} : vector<8x384xf32> to vector<8x128xf32>
    %168 = vector.extract_strided_slice %150 {offsets = [0, 256], sizes = [8, 128], strides = [1, 1]} : vector<8x384xf32> to vector<8x128xf32>
    %169 = arith.addf %168, %12 : vector<8x128xf32>
    %170 = arith.mulf %158, %169 : vector<8x128xf32>
    %171 = arith.addf %167, %170 : vector<8x128xf32>
    %172 = math.tanh %171 : vector<8x128xf32>
    %cst_59 = arith.constant 1.000000e+00 : f32
    %173 = vector.broadcast %cst_59 : f32 to vector<8x128xf32>
    %174 = arith.subf %173, %166 : vector<8x128xf32>
    %175 = arith.mulf %174, %172 : vector<8x128xf32>
    %176 = arith.mulf %166, %143 : vector<8x128xf32>
    %177 = arith.addf %175, %176 : vector<8x128xf32>
    %c4_60 = arith.constant 4 : index
    %c0_61 = arith.constant 0 : index
    %c0_62 = arith.constant 0 : index
    %178 = vector.load %arg10[%c4_60, %c0_61, %c0_62] : memref<8x8x128xf32, #tpu.memory_space<vmem>>, vector<1x8x128xf32>
    %179 = vector.shape_cast %178 : vector<1x8x128xf32> to vector<8x128xf32>
    %180 = vector.shape_cast %177 : vector<8x128xf32> to vector<1x8x128xf32>
    tpu.vector_store %arg10[%c4_60, %c0_61, %c0_62], %180 {strides = array<i32>} : memref<8x8x128xf32, #tpu.memory_space<vmem>>, vector<1x8x128xf32>,
    %c5 = arith.constant 5 : index
    %c0_63 = arith.constant 0 : index
    %c0_64 = arith.constant 0 : index
    %181 = vector.load %arg9[%c5, %c0_63, %c0_64] : memref<8x8x384xf32, #tpu.memory_space<vmem>>, vector<1x8x384xf32>
    %182 = vector.shape_cast %181 : vector<1x8x384xf32> to vector<8x384xf32>
    %183 = arith.truncf %177 : vector<8x128xf32> to vector<8x128xbf16>
    %cst_65 = arith.constant dense<0.000000e+00> : vector<8x384xf32>
    %184 = tpu.matmul %183, %6, %cst_65 {dimension_numbers = #tpu.dot_dimension_numbers<[1], [0], [0], [1], [0, 0, 1, 1], [], []>} : vector<8x128xbf16>, vector<128x384xbf16>, vector<8x384xf32> -> vector<8x384xf32>
    %185 = vector.extract_strided_slice %182 {offsets = [0, 0], sizes = [8, 128], strides = [1, 1]} : vector<8x384xf32> to vector<8x128xf32>
    %186 = vector.extract_strided_slice %184 {offsets = [0, 0], sizes = [8, 128], strides = [1, 1]} : vector<8x384xf32> to vector<8x128xf32>
    %187 = arith.addf %185, %186 : vector<8x128xf32>
    %188 = arith.negf %187 : vector<8x128xf32>
    %189 = math.exp %188 : vector<8x128xf32>
    %cst_66 = arith.constant 1.000000e+00 : f32
    %190 = vector.broadcast %cst_66 : f32 to vector<8x128xf32>
    %191 = arith.addf %190, %189 : vector<8x128xf32>
    %192 = arith.divf %190, %191 : vector<8x128xf32>
    %193 = vector.extract_strided_slice %182 {offsets = [0, 128], sizes = [8, 128], strides = [1, 1]} : vector<8x384xf32> to vector<8x128xf32>
    %194 = vector.extract_strided_slice %184 {offsets = [0, 128], sizes = [8, 128], strides = [1, 1]} : vector<8x384xf32> to vector<8x128xf32>
    %195 = arith.addf %193, %194 : vector<8x128xf32>
    %196 = arith.negf %195 : vector<8x128xf32>
    %197 = math.exp %196 : vector<8x128xf32>
    %cst_67 = arith.constant 1.000000e+00 : f32
    %198 = vector.broadcast %cst_67 : f32 to vector<8x128xf32>
    %199 = arith.addf %198, %197 : vector<8x128xf32>
    %200 = arith.divf %198, %199 : vector<8x128xf32>
    %201 = vector.extract_strided_slice %182 {offsets = [0, 256], sizes = [8, 128], strides = [1, 1]} : vector<8x384xf32> to vector<8x128xf32>
    %202 = vector.extract_strided_slice %184 {offsets = [0, 256], sizes = [8, 128], strides = [1, 1]} : vector<8x384xf32> to vector<8x128xf32>
    %203 = arith.addf %202, %12 : vector<8x128xf32>
    %204 = arith.mulf %192, %203 : vector<8x128xf32>
    %205 = arith.addf %201, %204 : vector<8x128xf32>
    %206 = math.tanh %205 : vector<8x128xf32>
    %cst_68 = arith.constant 1.000000e+00 : f32
    %207 = vector.broadcast %cst_68 : f32 to vector<8x128xf32>
    %208 = arith.subf %207, %200 : vector<8x128xf32>
    %209 = arith.mulf %208, %206 : vector<8x128xf32>
    %210 = arith.mulf %200, %177 : vector<8x128xf32>
    %211 = arith.addf %209, %210 : vector<8x128xf32>
    %c5_69 = arith.constant 5 : index
    %c0_70 = arith.constant 0 : index
    %c0_71 = arith.constant 0 : index
    %212 = vector.load %arg10[%c5_69, %c0_70, %c0_71] : memref<8x8x128xf32, #tpu.memory_space<vmem>>, vector<1x8x128xf32>
    %213 = vector.shape_cast %212 : vector<1x8x128xf32> to vector<8x128xf32>
    %214 = vector.shape_cast %211 : vector<8x128xf32> to vector<1x8x128xf32>
    tpu.vector_store %arg10[%c5_69, %c0_70, %c0_71], %214 {strides = array<i32>} : memref<8x8x128xf32, #tpu.memory_space<vmem>>, vector<1x8x128xf32>,
    %c6 = arith.constant 6 : index
    %c0_72 = arith.constant 0 : index
    %c0_73 = arith.constant 0 : index
    %215 = vector.load %arg9[%c6, %c0_72, %c0_73] : memref<8x8x384xf32, #tpu.memory_space<vmem>>, vector<1x8x384xf32>
    %216 = vector.shape_cast %215 : vector<1x8x384xf32> to vector<8x384xf32>
    %217 = arith.truncf %211 : vector<8x128xf32> to vector<8x128xbf16>
    %cst_74 = arith.constant dense<0.000000e+00> : vector<8x384xf32>
    %218 = tpu.matmul %217, %6, %cst_74 {dimension_numbers = #tpu.dot_dimension_numbers<[1], [0], [0], [1], [0, 0, 1, 1], [], []>} : vector<8x128xbf16>, vector<128x384xbf16>, vector<8x384xf32> -> vector<8x384xf32>
    %219 = vector.extract_strided_slice %216 {offsets = [0, 0], sizes = [8, 128], strides = [1, 1]} : vector<8x384xf32> to vector<8x128xf32>
    %220 = vector.extract_strided_slice %218 {offsets = [0, 0], sizes = [8, 128], strides = [1, 1]} : vector<8x384xf32> to vector<8x128xf32>
    %221 = arith.addf %219, %220 : vector<8x128xf32>
    %222 = arith.negf %221 : vector<8x128xf32>
    %223 = math.exp %222 : vector<8x128xf32>
    %cst_75 = arith.constant 1.000000e+00 : f32
    %224 = vector.broadcast %cst_75 : f32 to vector<8x128xf32>
    %225 = arith.addf %224, %223 : vector<8x128xf32>
    %226 = arith.divf %224, %225 : vector<8x128xf32>
    %227 = vector.extract_strided_slice %216 {offsets = [0, 128], sizes = [8, 128], strides = [1, 1]} : vector<8x384xf32> to vector<8x128xf32>
    %228 = vector.extract_strided_slice %218 {offsets = [0, 128], sizes = [8, 128], strides = [1, 1]} : vector<8x384xf32> to vector<8x128xf32>
    %229 = arith.addf %227, %228 : vector<8x128xf32>
    %230 = arith.negf %229 : vector<8x128xf32>
    %231 = math.exp %230 : vector<8x128xf32>
    %cst_76 = arith.constant 1.000000e+00 : f32
    %232 = vector.broadcast %cst_76 : f32 to vector<8x128xf32>
    %233 = arith.addf %232, %231 : vector<8x128xf32>
    %234 = arith.divf %232, %233 : vector<8x128xf32>
    %235 = vector.extract_strided_slice %216 {offsets = [0, 256], sizes = [8, 128], strides = [1, 1]} : vector<8x384xf32> to vector<8x128xf32>
    %236 = vector.extract_strided_slice %218 {offsets = [0, 256], sizes = [8, 128], strides = [1, 1]} : vector<8x384xf32> to vector<8x128xf32>
    %237 = arith.addf %236, %12 : vector<8x128xf32>
    %238 = arith.mulf %226, %237 : vector<8x128xf32>
    %239 = arith.addf %235, %238 : vector<8x128xf32>
    %240 = math.tanh %239 : vector<8x128xf32>
    %cst_77 = arith.constant 1.000000e+00 : f32
    %241 = vector.broadcast %cst_77 : f32 to vector<8x128xf32>
    %242 = arith.subf %241, %234 : vector<8x128xf32>
    %243 = arith.mulf %242, %240 : vector<8x128xf32>
    %244 = arith.mulf %234, %211 : vector<8x128xf32>
    %245 = arith.addf %243, %244 : vector<8x128xf32>
    %c6_78 = arith.constant 6 : index
    %c0_79 = arith.constant 0 : index
    %c0_80 = arith.constant 0 : index
    %246 = vector.load %arg10[%c6_78, %c0_79, %c0_80] : memref<8x8x128xf32, #tpu.memory_space<vmem>>, vector<1x8x128xf32>
    %247 = vector.shape_cast %246 : vector<1x8x128xf32> to vector<8x128xf32>
    %248 = vector.shape_cast %245 : vector<8x128xf32> to vector<1x8x128xf32>
    tpu.vector_store %arg10[%c6_78, %c0_79, %c0_80], %248 {strides = array<i32>} : memref<8x8x128xf32, #tpu.memory_space<vmem>>, vector<1x8x128xf32>,
    %c7 = arith.constant 7 : index
    %c0_81 = arith.constant 0 : index
    %c0_82 = arith.constant 0 : index
    %249 = vector.load %arg9[%c7, %c0_81, %c0_82] : memref<8x8x384xf32, #tpu.memory_space<vmem>>, vector<1x8x384xf32>
    %250 = vector.shape_cast %249 : vector<1x8x384xf32> to vector<8x384xf32>
    %251 = arith.truncf %245 : vector<8x128xf32> to vector<8x128xbf16>
    %cst_83 = arith.constant dense<0.000000e+00> : vector<8x384xf32>
    %252 = tpu.matmul %251, %6, %cst_83 {dimension_numbers = #tpu.dot_dimension_numbers<[1], [0], [0], [1], [0, 0, 1, 1], [], []>} : vector<8x128xbf16>, vector<128x384xbf16>, vector<8x384xf32> -> vector<8x384xf32>
    %253 = vector.extract_strided_slice %250 {offsets = [0, 0], sizes = [8, 128], strides = [1, 1]} : vector<8x384xf32> to vector<8x128xf32>
    %254 = vector.extract_strided_slice %252 {offsets = [0, 0], sizes = [8, 128], strides = [1, 1]} : vector<8x384xf32> to vector<8x128xf32>
    %255 = arith.addf %253, %254 : vector<8x128xf32>
    %256 = arith.negf %255 : vector<8x128xf32>
    %257 = math.exp %256 : vector<8x128xf32>
    %cst_84 = arith.constant 1.000000e+00 : f32
    %258 = vector.broadcast %cst_84 : f32 to vector<8x128xf32>
    %259 = arith.addf %258, %257 : vector<8x128xf32>
    %260 = arith.divf %258, %259 : vector<8x128xf32>
    %261 = vector.extract_strided_slice %250 {offsets = [0, 128], sizes = [8, 128], strides = [1, 1]} : vector<8x384xf32> to vector<8x128xf32>
    %262 = vector.extract_strided_slice %252 {offsets = [0, 128], sizes = [8, 128], strides = [1, 1]} : vector<8x384xf32> to vector<8x128xf32>
    %263 = arith.addf %261, %262 : vector<8x128xf32>
    %264 = arith.negf %263 : vector<8x128xf32>
    %265 = math.exp %264 : vector<8x128xf32>
    %cst_85 = arith.constant 1.000000e+00 : f32
    %266 = vector.broadcast %cst_85 : f32 to vector<8x128xf32>
    %267 = arith.addf %266, %265 : vector<8x128xf32>
    %268 = arith.divf %266, %267 : vector<8x128xf32>
    %269 = vector.extract_strided_slice %250 {offsets = [0, 256], sizes = [8, 128], strides = [1, 1]} : vector<8x384xf32> to vector<8x128xf32>
    %270 = vector.extract_strided_slice %252 {offsets = [0, 256], sizes = [8, 128], strides = [1, 1]} : vector<8x384xf32> to vector<8x128xf32>
    %271 = arith.addf %270, %12 : vector<8x128xf32>
    %272 = arith.mulf %260, %271 : vector<8x128xf32>
    %273 = arith.addf %269, %272 : vector<8x128xf32>
    %274 = math.tanh %273 : vector<8x128xf32>
    %cst_86 = arith.constant 1.000000e+00 : f32
    %275 = vector.broadcast %cst_86 : f32 to vector<8x128xf32>
    %276 = arith.subf %275, %268 : vector<8x128xf32>
    %277 = arith.mulf %276, %274 : vector<8x128xf32>
    %278 = arith.mulf %268, %245 : vector<8x128xf32>
    %279 = arith.addf %277, %278 : vector<8x128xf32>
    %c7_87 = arith.constant 7 : index
    %c0_88 = arith.constant 0 : index
    %c0_89 = arith.constant 0 : index
    %280 = vector.load %arg10[%c7_87, %c0_88, %c0_89] : memref<8x8x128xf32, #tpu.memory_space<vmem>>, vector<1x8x128xf32>
    %281 = vector.shape_cast %280 : vector<1x8x128xf32> to vector<8x128xf32>
    %282 = vector.shape_cast %279 : vector<8x128xf32> to vector<1x8x128xf32>
    tpu.vector_store %arg10[%c7_87, %c0_88, %c0_89], %282 {strides = array<i32>} : memref<8x8x128xf32, #tpu.memory_space<vmem>>, vector<1x8x128xf32>,
    %283 = arith.truncf %279 : vector<8x128xf32> to vector<8x128xbf16>
    %c0_90 = arith.constant 0 : index
    %c0_91 = arith.constant 0 : index
    %284 = vector.load %arg6[%c0_90, %c0_91] : memref<128x128xbf16, #tpu.memory_space<vmem>>, vector<128x128xbf16>
    %cst_92 = arith.constant dense<0.000000e+00> : vector<8x128xf32>
    %285 = tpu.matmul %283, %284, %cst_92 {dimension_numbers = #tpu.dot_dimension_numbers<[1], [0], [0], [1], [0, 0, 1, 1], [], []>} : vector<8x128xbf16>, vector<128x128xbf16>, vector<8x128xf32> -> vector<8x128xf32>
    %c0_93 = arith.constant 0 : index
    %c0_94 = arith.constant 0 : index
    %286 = vector.load %arg7[%c0_93, %c0_94] : memref<1x128xf32, #tpu.memory_space<vmem>>, vector<1x128xf32>
    %287 = vector.broadcast %286 : vector<1x128xf32> to vector<8x128xf32>
    %288 = arith.addf %285, %287 : vector<8x128xf32>
    %c0_95 = arith.constant 0 : index
    %c0_96 = arith.constant 0 : index
    %289 = vector.load %arg8[%c0_95, %c0_96] : memref<8x128xf32, #tpu.memory_space<vmem>>, vector<8x128xf32>
    tpu.vector_store %arg8[%c0_95, %c0_96], %288 {strides = array<i32>} : memref<8x128xf32, #tpu.memory_space<vmem>>, vector<8x128xf32>,
    return
  }
  func.func @transform_0(%arg0: i32) -> (i32, i32, i32) {
    %c0_i32 = arith.constant 0 : i32
    %c0_i32_0 = arith.constant 0 : i32
    %c0_i32_1 = arith.constant 0 : i32
    %c0_i32_2 = arith.constant 0 : i32
    return %c0_i32, %c0_i32_0, %c0_i32_1 : i32, i32, i32
  }
  func.func @transform_1(%arg0: i32) -> (i32, i32, i32) {
    %c0_i32 = arith.constant 0 : i32
    %c0_i32_0 = arith.constant 0 : i32
    %c0_i32_1 = arith.constant 0 : i32
    return %arg0, %c0_i32, %c0_i32_0 : i32, i32, i32
  }
  func.func @transform_2(%arg0: i32) -> (i32, i32, i32) {
    %c0_i32 = arith.constant 0 : i32
    %c0_i32_0 = arith.constant 0 : i32
    %c0_i32_1 = arith.constant 0 : i32
    return %arg0, %c0_i32, %c0_i32_0 : i32, i32, i32
  }
  func.func @transform_3(%arg0: i32) -> (i32, i32, i32) {
    %c0_i32 = arith.constant 0 : i32
    %c0_i32_0 = arith.constant 0 : i32
    %c0_i32_1 = arith.constant 0 : i32
    return %arg0, %c0_i32, %c0_i32_0 : i32, i32, i32
  }
  func.func @transform_4(%arg0: i32) -> (i32, i32, i32) {
    %c0_i32 = arith.constant 0 : i32
    %c0_i32_0 = arith.constant 0 : i32
    %c0_i32_1 = arith.constant 0 : i32
    return %arg0, %c0_i32, %c0_i32_0 : i32, i32, i32
  }
  func.func @transform_5(%arg0: i32) -> (i32, i32) {
    %c0_i32 = arith.constant 0 : i32
    %c0_i32_0 = arith.constant 0 : i32
    %c0_i32_1 = arith.constant 0 : i32
    return %c0_i32, %c0_i32_0 : i32, i32
  }
  func.func @transform_6(%arg0: i32) -> (i32, i32) {
    %c0_i32 = arith.constant 0 : i32
    %c0_i32_0 = arith.constant 0 : i32
    %c0_i32_1 = arith.constant 0 : i32
    return %c0_i32, %c0_i32_0 : i32, i32
  }
  func.func @transform_7(%arg0: i32) -> (i32, i32) {
    %c0_i32 = arith.constant 0 : i32
    %c0_i32_0 = arith.constant 0 : i32
    %c0_i32_1 = arith.constant 0 : i32
    return %c0_i32, %c0_i32_0 : i32, i32
  }
}

</mosaic_0001>

<llo_original>
// kernel: tpu_custom_call.1
$region0: #{tpu_custom_call.1}
  #allocation0 [shape = 'u32[]', space=smem, size = 0x4, offset = 0x4, fixed_abs, tag = 'smem constant byte address 0x4 - core index']
  #allocation1 [shape = 'u32[144,128]{1,0:T(1,128)}', space=vmem, size = 0x12000, scoped, tag = 'internal scratch']
  #allocation2 [shape = 'f32[8,8,384]{2,1,0:T(8,128)}', space=vmem, size = 0x18000, scoped, tag = 'scratch operand']
  #allocation3 [shape = 'f32[8,8,128]{2,1,0:T(8,128)}', space=vmem, size = 0x8000, scoped, tag = 'scratch operand']
  %s0 = inlined_call_operand.hbm [shape: f32[8,8,128], index: 0, kind: input, shape index: {}]
  %s1 = inlined_call_operand.hbm [shape: bf16[4,128,384], index: 1, kind: input, shape index: {}]
  %s2 = inlined_call_operand.hbm [shape: bf16[4,128,384], index: 2, kind: input, shape index: {}]
  %s3 = inlined_call_operand.hbm [shape: f32[4,1,384], index: 3, kind: input, shape index: {}]
  %s4 = inlined_call_operand.vmem [shape: f32[4,1,128], index: 4, kind: input, shape index: {}]
  %s5 = inlined_call_operand.hbm [shape: bf16[128,128], index: 5, kind: input, shape index: {}]
  %s6 = inlined_call_operand.vmem [shape: f32[1,128], index: 6, kind: input, shape index: {}]
  %s7 = inlined_call_operand.hbm [shape: f32[8,128], index: 7, kind: output, shape index: {}]
  %s8 = sld [smem:[#allocation0]]
  $region85: #{tpu_custom_call.1} parent=0
    _
  %s10 = ssub.s32 1, %s8
  %s11 = scalar_select 0, %s10, %s8
  $region1: #{tpu_custom_call.1} parent=0
    #allocation4 [shape = 'u8[32768]{0}', space=vmem, size = 0x8000, scoped, tag = 'input window, operand 0, single buffered']
    #allocation5 [shape = 's32[2]{0}', space=sflag, size = 0x8, scoped, tag = 'scoped memory for tpu_custom_call.1']
    #allocation6 [shape = 's32[2]{0}', space=sflag, size = 0x8, scoped, tag = 'scoped memory for tpu_custom_call.1']
    #allocation7 [shape = 'u8[196608]{0}', space=vmem, size = 0x30000, scoped, tag = 'input window, operand 1']
    #allocation8 [shape = 's32[2]{0}', space=sflag, size = 0x8, scoped, tag = 'scoped memory for tpu_custom_call.1']
    #allocation9 [shape = 'u8[196608]{0}', space=vmem, size = 0x30000, scoped, tag = 'input window, operand 2']
    #allocation10 [shape = 'u8[3072]{0}', space=vmem, size = 0xc00, scoped, tag = 'input window, operand 3']
    #allocation11 [shape = 's32[2]{0}', space=sflag, size = 0x8, scoped, tag = 'scoped memory for tpu_custom_call.1']
    #allocation12 [shape = 'u8[32768]{0}', space=vmem, size = 0x8000, scoped, tag = 'input window, operand 5, single buffered']
    #allocation13 [shape = 'u8[4096]{0}', space=vmem, size = 0x1000, scoped, tag = 'output window, operand 0, single buffered']
    %12 = vsyncpa [#allocation5], 0
    %13 = vsyncpa [#allocation8], 0
    %s14 = scalar_lea.sflag [#allocation8], 1
    %15 = vsyncpa %s14, 0
    %16 = vsyncpa [#allocation11], 0
    %s17 = scalar_lea.sflag [#allocation11], 1
    %18 = vsyncpa %s17, 0
    %19 = vsyncpa [#allocation6], 0
    loop: start=0, step=1, limit=6
    $region2: #{tpu_custom_call.1} parent=1 // loop_pre_header
      _
    $region3: #{tpu_custom_call.1} parent=1 // loop_header
      %s21 = sphi 0, %s25
      %p22 = scmp.ge.s32.totalorder %s21, 6
      %s29 = sphi 0, %s29
      %s31 = sphi 0, %s29
      %s32 = sphi 0, %s31
      %s46 = sphi 0, %s32
      %s52 = sphi 0, %s54
      %s55 = sphi 0, %s52
      %s56 = sphi 0, %s55
      %s72 = sphi 0, %s56
      %s78 = sphi 0, %s80
      %s81 = sphi 0, %s78
      %s82 = sphi 0, %s81
      %s98 = sphi 0, %s82
      %s104 = sphi 0, %s106
      %s107 = sphi 0, %s104
      %s108 = sphi 0, %s107
      %s124 = sphi 0, %s108
      %s130 = sphi 0, %s132
      %s133 = sphi 0, %s130
      %s134 = sphi 0, %s133
      %s150 = sphi 0, %s134
      %s154 = sphi 0, %s154
      %s156 = sphi 0, %s154
      %s157 = sphi 0, %s156
      %s171 = sphi 0, %s157
      %s175 = sphi 0, %s175
      %s177 = sphi 0, %s175
      %s178 = sphi 0, %s177
      %s192 = sphi 0, %s178
      %s196 = sphi 0, %s196
      %s198 = sphi 0, %s196
      %s199 = sphi 0, %s198
      %s213 = sphi 0, %s199
    $region4: #{tpu_custom_call.1} parent=1 // loop_header_branch
      %24 = sbr.rel (%p22) target = $region8
    $region5: #{tpu_custom_call.1} parent=1 // loop_body
      %s26 = ssub.s32 %s21, 1
      %s27 = ssub.s32 %s21, 2
      %s28 = sadd.s32 %s21, 1
      %s30 = sadd.s32 %s29, 1
      %p33 = scmp.eq.s32.totalorder %s21, 3
      %p34 = scmp.ne.s32.totalorder %s29, %s31
      %p35 = scmp.eq.s32.totalorder %s21, 0
      %p36 = por %p34, %p35
      %p37 = scmp.ne.s32.totalorder %s29, %s31
      %p38 = scmp.eq.s32.totalorder %s26, 3
      %p39 = por %p37, %p38
      %p40 = scmp.ne.s32.totalorder %s31, %s32
      %p41 = scmp.eq.s32.totalorder %s26, 0
      %p42 = por %p40, %p41
      %p43 = scmp.ne.s32.totalorder %s31, %s32
      %p44 = scmp.eq.s32.totalorder %s27, 3
      %p45 = por %p43, %p44
      %p47 = scmp.ne.s32.totalorder %s32, %s46
      %p48 = scmp.eq.s32.totalorder %s27, 0
      %p49 = por %p47, %p48
      %s50 = ssub.s32 %s21, %s28
      %p51 = scmp.eq.s32.totalorder %s50, 0
      %s53 = sadd.s32 %s52, 1
      %s54 = scalar_select %p51, %s52, %s53
      %p57 = pneg %p51
      %p58 = scmp.eq.s32.totalorder %s21, 3
      %p59 = por %p57, %p58
      %p60 = scmp.ne.s32.totalorder %s52, %s55
      %p61 = scmp.eq.s32.totalorder %s21, 0
      %p62 = por %p60, %p61
      %p63 = scmp.ne.s32.totalorder %s52, %s55
      %p64 = scmp.eq.s32.totalorder %s26, 3
      %p65 = por %p63, %p64
      %p66 = scmp.ne.s32.totalorder %s55, %s56
      %p67 = scmp.eq.s32.totalorder %s26, 0
      %p68 = por %p66, %p67
      %p69 = scmp.ne.s32.totalorder %s55, %s56
      %p70 = scmp.eq.s32.totalorder %s27, 3
      %p71 = por %p69, %p70
      %p73 = scmp.ne.s32.totalorder %s56, %s72
      %p74 = scmp.eq.s32.totalorder %s27, 0
      %p75 = por %p73, %p74
      %s76 = ssub.s32 %s21, %s28
      %p77 = scmp.eq.s32.totalorder %s76, 0
      %s79 = sadd.s32 %s78, 1
      %s80 = scalar_select %p77, %s78, %s79
      %p83 = pneg %p77
      %p84 = scmp.eq.s32.totalorder %s21, 3
      %p85 = por %p83, %p84
      %p86 = scmp.ne.s32.totalorder %s78, %s81
      %p87 = scmp.eq.s32.totalorder %s21, 0
      %p88 = por %p86, %p87
      %p89 = scmp.ne.s32.totalorder %s78, %s81
      %p90 = scmp.eq.s32.totalorder %s26, 3
      %p91 = por %p89, %p90
      %p92 = scmp.ne.s32.totalorder %s81, %s82
      %p93 = scmp.eq.s32.totalorder %s26, 0
      %p94 = por %p92, %p93
      %p95 = scmp.ne.s32.totalorder %s81, %s82
      %p96 = scmp.eq.s32.totalorder %s27, 3
      %p97 = por %p95, %p96
      %p99 = scmp.ne.s32.totalorder %s82, %s98
      %p100 = scmp.eq.s32.totalorder %s27, 0
      %p101 = por %p99, %p100
      %s102 = ssub.s32 %s21, %s28
      %p103 = scmp.eq.s32.totalorder %s102, 0
      %s105 = sadd.s32 %s104, 1
      %s106 = scalar_select %p103, %s104, %s105
      %p109 = pneg %p103
      %p110 = scmp.eq.s32.totalorder %s21, 3
      %p111 = por %p109, %p110
      %p112 = scmp.ne.s32.totalorder %s104, %s107
      %p113 = scmp.eq.s32.totalorder %s21, 0
      %p114 = por %p112, %p113
      %p115 = scmp.ne.s32.totalorder %s104, %s107
      %p116 = scmp.eq.s32.totalorder %s26, 3
      %p117 = por %p115, %p116
      %p118 = scmp.ne.s32.totalorder %s107, %s108
      %p119 = scmp.eq.s32.totalorder %s26, 0
      %p120 = por %p118, %p119
      %p121 = scmp.ne.s32.totalorder %s107, %s108
      %p122 = scmp.eq.s32.totalorder %s27, 3
      %p123 = por %p121, %p122
      %p125 = scmp.ne.s32.totalorder %s108, %s124
      %p126 = scmp.eq.s32.totalorder %s27, 0
      %p127 = por %p125, %p126
      %s128 = ssub.s32 %s21, %s28
      %p129 = scmp.eq.s32.totalorder %s128, 0
      %s131 = sadd.s32 %s130, 1
      %s132 = scalar_select %p129, %s130, %s131
      %p135 = pneg %p129
      %p136 = scmp.eq.s32.totalorder %s21, 3
      %p137 = por %p135, %p136
      %p138 = scmp.ne.s32.totalorder %s130, %s133
      %p139 = scmp.eq.s32.totalorder %s21, 0
      %p140 = por %p138, %p139
      %p141 = scmp.ne.s32.totalorder %s130, %s133
      %p142 = scmp.eq.s32.totalorder %s26, 3
      %p143 = por %p141, %p142
      %p144 = scmp.ne.s32.totalorder %s133, %s134
      %p145 = scmp.eq.s32.totalorder %s26, 0
      %p146 = por %p144, %p145
      %p147 = scmp.ne.s32.totalorder %s133, %s134
      %p148 = scmp.eq.s32.totalorder %s27, 3
      %p149 = por %p147, %p148
      %p151 = scmp.ne.s32.totalorder %s134, %s150
      %p152 = scmp.eq.s32.totalorder %s27, 0
      %p153 = por %p151, %p152
      %s155 = sadd.s32 %s154, 1
      %p158 = scmp.eq.s32.totalorder %s21, 3
      %p159 = scmp.ne.s32.totalorder %s154, %s156
      %p160 = scmp.eq.s32.totalorder %s21, 0
      %p161 = por %p159, %p160
      %p162 = scmp.ne.s32.totalorder %s154, %s156
      %p163 = scmp.eq.s32.totalorder %s26, 3
      %p164 = por %p162, %p163
      %p165 = scmp.ne.s32.totalorder %s156, %s157
      %p166 = scmp.eq.s32.totalorder %s26, 0
      %p167 = por %p165, %p166
      %p168 = scmp.ne.s32.totalorder %s156, %s157
      %p169 = scmp.eq.s32.totalorder %s27, 3
      %p170 = por %p168, %p169
      %p172 = scmp.ne.s32.totalorder %s157, %s171
      %p173 = scmp.eq.s32.totalorder %s27, 0
      %p174 = por %p172, %p173
      %s176 = sadd.s32 %s175, 1
      %p179 = scmp.eq.s32.totalorder %s21, 3
      %p180 = scmp.ne.s32.totalorder %s175, %s177
      %p181 = scmp.eq.s32.totalorder %s21, 0
      %p182 = por %p180, %p181
      %p183 = scmp.ne.s32.totalorder %s175, %s177
      %p184 = scmp.eq.s32.totalorder %s26, 3
      %p185 = por %p183, %p184
      %p186 = scmp.ne.s32.totalorder %s177, %s178
      %p187 = scmp.eq.s32.totalorder %s26, 0
      %p188 = por %p186, %p187
      %p189 = scmp.ne.s32.totalorder %s177, %s178
      %p190 = scmp.eq.s32.totalorder %s27, 3
      %p191 = por %p189, %p190
      %p193 = scmp.ne.s32.totalorder %s178, %s192
      %p194 = scmp.eq.s32.totalorder %s27, 0
      %p195 = por %p193, %p194
      %s197 = sadd.s32 %s196, 1
      %p200 = scmp.eq.s32.totalorder %s21, 3
      %p201 = scmp.ne.s32.totalorder %s196, %s198
      %p202 = scmp.eq.s32.totalorder %s21, 0
      %p203 = por %p201, %p202
      %p204 = scmp.ne.s32.totalorder %s196, %s198
      %p205 = scmp.eq.s32.totalorder %s26, 3
      %p206 = por %p204, %p205
      %p207 = scmp.ne.s32.totalorder %s198, %s199
      %p208 = scmp.eq.s32.totalorder %s26, 0
      %p209 = por %p207, %p208
      %p210 = scmp.ne.s32.totalorder %s198, %s199
      %p211 = scmp.eq.s32.totalorder %s27, 3
      %p212 = por %p210, %p211
      %p214 = scmp.ne.s32.totalorder %s199, %s213
      %p215 = scmp.eq.s32.totalorder %s27, 0
      %p216 = por %p214, %p215
      %p217 = scmp.le.s32.totalorder 1, %s21
      %p218 = scmp.lt.s32.totalorder %s21, 5
      %p219 = pnand %p217, %p218
      %p220 = pneg %p219
      // Predicated region
      $region9: #{tpu_custom_call.1} parent=5 // pred_check
        _
      $region10: #{tpu_custom_call.1} parent=5 // pred_check_branch
        %222 = sbr.rel (%p219) target = $region12
      $region11: #{tpu_custom_call.1} parent=5 // pred_region
        %s223 = ssub.s32 %s21, 1
        // Predicated region
        $region13: #{tpu_custom_call.1} parent=11 // pred_check
          %p224 = pneg %p42
        $region14: #{tpu_custom_call.1} parent=11 // pred_check_branch
          %226 = sbr.rel (%p224) target = $region16
        $region15: #{tpu_custom_call.1} parent=11 // pred_region
          %s228 = ssub.s32 1024, 1024
          %229 = vsyncadd [#allocation5], %s228
          %s230 = sshll.u32 [#allocation4], 4
          %s231 = int_to_ptr.vmem [resolvable:$true] %s230
          %236 = dma.hbm_to_vmem [thread:$0]  %s0, 1024, %s231, [#allocation5], 128, 128, 8
        $region16: #{tpu_custom_call.1} parent=11 // pred_fallthru
          _
        // Predicated region
        $region17: #{tpu_custom_call.1} parent=11 // pred_check
          %p237 = pneg %p167
        $region18: #{tpu_custom_call.1} parent=11 // pred_check_branch
          %239 = sbr.rel (%p237) target = $region20
        $region19: #{tpu_custom_call.1} parent=11 // pred_region
          %s241 = ssub.s32 1024, 1024
          %242 = vsyncadd [#allocation11], %s241
          %s243 = sshll.u32 [#allocation12], 4
          %s244 = int_to_ptr.vmem [resolvable:$true] %s243
          %249 = dma.hbm_to_vmem [thread:$0]  %s5, 1024, %s244, [#allocation11], 64, 64, 4
        $region20: #{tpu_custom_call.1} parent=11 // pred_fallthru
          _
        // Predicated region
        $region21: #{tpu_custom_call.1} parent=11 // pred_check
          %p250 = pneg %p188
        $region22: #{tpu_custom_call.1} parent=11 // pred_check_branch
          %252 = sbr.rel (%p250) target = $region24
        $region23: #{tpu_custom_call.1} parent=11 // pred_region
          _
        $region24: #{tpu_custom_call.1} parent=11 // pred_fallthru
          _
      $region12: #{tpu_custom_call.1} parent=5 // pred_fallthru
        _
      %p253 = scmp.lt.s32.totalorder %s21, 4
      // Predicated region
      $region25: #{tpu_custom_call.1} parent=5 // pred_check
        %p254 = pneg %p253
      $region26: #{tpu_custom_call.1} parent=5 // pred_check_branch
        %256 = sbr.rel (%p254) target = $region28
      $region27: #{tpu_custom_call.1} parent=5 // pred_region
        // Predicated region
        $region29: #{tpu_custom_call.1} parent=27 // pred_check
          %p257 = pneg %p62
        $region30: #{tpu_custom_call.1} parent=27 // pred_check_branch
          %259 = sbr.rel (%p257) target = $region32
        $region31: #{tpu_custom_call.1} parent=27 // pred_region
          %s260 = sand.u32 %s21, 1
          %s261 = scalar_lea.sflag [#allocation8], %s260
          %s262 = sand.u32 %s52, 1
          %s263 = smul.addr %s262, 192
          %s264 = scalar_lea.vmem [#allocation7], %s263
          %s266 = ssub.s32 3072, 3072
          %267 = vsyncadd %s261, %s266
          %s268 = smul.addr %s21, 48
          %s269 = smul.addr %s268, 64
          %s270 = scalar_lea.hbm %s1, %s269
          %s271 = sshll.u32 %s264, 4
          %s272 = int_to_ptr.vmem [resolvable:$true] %s271
          %277 = dma.hbm_to_vmem [thread:$0]  %s270, 3072, %s272, %s261, 192, 192, 12
        $region32: #{tpu_custom_call.1} parent=27 // pred_fallthru
          _
        // Predicated region
        $region33: #{tpu_custom_call.1} parent=27 // pred_check
          %p278 = pneg %p88
        $region34: #{tpu_custom_call.1} parent=27 // pred_check_branch
          %280 = sbr.rel (%p278) target = $region36
        $region35: #{tpu_custom_call.1} parent=27 // pred_region
          %s281 = sand.u32 %s21, 1
          %s282 = scalar_lea.sflag [#allocation8], %s281
          %s283 = sand.u32 %s78, 1
          %s284 = smul.addr %s283, 192
          %s285 = scalar_lea.vmem [#allocation9], %s284
          %s287 = ssub.s32 3072, 3072
          %288 = vsyncadd %s282, %s287
          %s289 = smul.addr %s21, 48
          %s290 = smul.addr %s289, 64
          %s291 = scalar_lea.hbm %s2, %s290
          %s292 = sshll.u32 %s285, 4
          %s293 = int_to_ptr.vmem [resolvable:$true] %s292
          %298 = dma.hbm_to_vmem [thread:$0]  %s291, 3072, %s293, %s282, 192, 192, 12
        $region36: #{tpu_custom_call.1} parent=27 // pred_fallthru
          _
        // Predicated region
        $region37: #{tpu_custom_call.1} parent=27 // pred_check
          %p299 = pneg %p114
        $region38: #{tpu_custom_call.1} parent=27 // pred_check_branch
          %301 = sbr.rel (%p299) target = $region40
        $region39: #{tpu_custom_call.1} parent=27 // pred_region
          %s302 = sand.u32 %s21, 1
          %s303 = scalar_lea.sflag [#allocation11], %s302
          %s304 = sand.u32 %s104, 1
          %s305 = smul.addr %s304, 3
          %s306 = scalar_lea.vmem [#allocation10], %s305
          %s308 = ssub.s32 48, 48
          %309 = vsyncadd %s303, %s308
          %s310 = smul.addr %s21, 3
          %s311 = smul.addr %s310, 16
          %s312 = scalar_lea.hbm %s3, %s311
          %s314 = sshll.u32 %s306, 4
          %s315 = int_to_ptr.vmem [resolvable:$true] %s314
          %317 = dma.hbm_to_vmem [thread:$0]  %s312, 48, %s315, %s303
        $region40: #{tpu_custom_call.1} parent=27 // pred_fallthru
          _
        // Predicated region
        $region41: #{tpu_custom_call.1} parent=27 // pred_check
          %p318 = pneg %p140
        $region42: #{tpu_custom_call.1} parent=27 // pred_check_branch
          %320 = sbr.rel (%p318) target = $region44
        $region43: #{tpu_custom_call.1} parent=27 // pred_region
          %p321 = scmp.lt.s32.totalorder %s21, 3
          %s322 = scalar_select %p321, %s21, 3
          %s323 = scalar_lea.vmem %s4, %s322
        $region44: #{tpu_custom_call.1} parent=27 // pred_fallthru
          _
      $region28: #{tpu_custom_call.1} parent=5 // pred_fallthru
        _
      %p324 = scmp.le.s32.totalorder 1, %s21
      %p325 = scmp.lt.s32.totalorder %s21, 5
      %p326 = pnand %p324, %p325
      %p327 = pneg %p326
      // Predicated region
      $region45: #{tpu_custom_call.1} parent=5 // pred_check
        _
      $region46: #{tpu_custom_call.1} parent=5 // pred_check_branch
        %329 = sbr.rel (%p326) target = $region48
      $region47: #{tpu_custom_call.1} parent=5 // pred_region
        %s330 = ssub.s32 %s21, 1
        // Predicated region
        $region49: #{tpu_custom_call.1} parent=47 // pred_check
          %p331 = pneg %p42
        $region50: #{tpu_custom_call.1} parent=47 // pred_check_branch
          %333 = sbr.rel (%p331) target = $region52
        $region51: #{tpu_custom_call.1} parent=47 // pred_region
          %334 = dma.done [#allocation5], 1024
        $region52: #{tpu_custom_call.1} parent=47 // pred_fallthru
          _
        %s335 = sand.u32 %s26, 1
        %s336 = scalar_lea.sflag [#allocation8], %s335
        %s337 = sand.u32 %s55, 1
        %s338 = smul.addr %s337, 192
        %s339 = scalar_lea.vmem [#allocation7], %s338
        // Predicated region
        $region53: #{tpu_custom_call.1} parent=47 // pred_check
          %p340 = pneg %p68
        $region54: #{tpu_custom_call.1} parent=47 // pred_check_branch
          %342 = sbr.rel (%p340) target = $region56
        $region55: #{tpu_custom_call.1} parent=47 // pred_region
          %343 = dma.done %s336, 3072
        $region56: #{tpu_custom_call.1} parent=47 // pred_fallthru
          _
        %s344 = sand.u32 %s26, 1
        %s345 = scalar_lea.sflag [#allocation8], %s344
        %s346 = sand.u32 %s81, 1
        %s347 = smul.addr %s346, 192
        %s348 = scalar_lea.vmem [#allocation9], %s347
        // Predicated region
        $region57: #{tpu_custom_call.1} parent=47 // pred_check
          %p349 = pneg %p94
        $region58: #{tpu_custom_call.1} parent=47 // pred_check_branch
          %351 = sbr.rel (%p349) target = $region60
        $region59: #{tpu_custom_call.1} parent=47 // pred_region
          %352 = dma.done %s345, 3072
        $region60: #{tpu_custom_call.1} parent=47 // pred_fallthru
          _
        %s353 = sand.u32 %s26, 1
        %s354 = scalar_lea.sflag [#allocation11], %s353
        %s355 = sand.u32 %s107, 1
        %s356 = smul.addr %s355, 3
        %s357 = scalar_lea.vmem [#allocation10], %s356
        // Predicated region
        $region61: #{tpu_custom_call.1} parent=47 // pred_check
          %p358 = pneg %p120
        $region62: #{tpu_custom_call.1} parent=47 // pred_check_branch
          %360 = sbr.rel (%p358) target = $region64
        $region63: #{tpu_custom_call.1} parent=47 // pred_region
          %361 = dma.done %s354, 48
        $region64: #{tpu_custom_call.1} parent=47 // pred_fallthru
          _
        // Predicated region
        $region65: #{tpu_custom_call.1} parent=47 // pred_check
          %p362 = pneg %p167
        $region66: #{tpu_custom_call.1} parent=47 // pred_check_branch
          %364 = sbr.rel (%p362) target = $region68
        $region67: #{tpu_custom_call.1} parent=47 // pred_region
          %365 = dma.done [#allocation11], 1024
        $region68: #{tpu_custom_call.1} parent=47 // pred_fallthru
          _
        %p366 = pneg %p42
        %p367 = pneg %p39
        %s368 = sand.u32 %s26, 1
        %s369 = scalar_lea.sflag [#allocation8], %s368
        %s370 = sand.u32 %s55, 1
        %s371 = smul.addr %s370, 192
        %s372 = scalar_lea.vmem [#allocation7], %s371
        %p373 = pneg %p68
        %p374 = pneg %p65
        %s375 = sand.u32 %s26, 1
        %s376 = scalar_lea.sflag [#allocation8], %s375
        %s377 = sand.u32 %s81, 1
        %s378 = smul.addr %s377, 192
        %s379 = scalar_lea.vmem [#allocation9], %s378
        %p380 = pneg %p94
        %p381 = pneg %p91
        %s382 = sand.u32 %s26, 1
        %s383 = scalar_lea.sflag [#allocation11], %s382
        %s384 = sand.u32 %s107, 1
        %s385 = smul.addr %s384, 3
        %s386 = scalar_lea.vmem [#allocation10], %s385
        %p387 = pneg %p120
        %p388 = pneg %p117
        %p389 = scmp.lt.s32.totalorder %s26, 3
        %s390 = scalar_select %p389, %s26, 3
        %s391 = scalar_lea.vmem %s4, %s390
        %p392 = pneg %p146
        %p393 = pneg %p143
        %p394 = pneg %p167
        %p395 = pneg %p164
        %p396 = pneg %p188
        %p397 = pneg %p185
        %p398 = pneg %p209
        %p399 = pneg %p206
        %p400 = scmp.lt.s32.totalorder %s26, 3
        %s401 = scalar_select %p400, %s26, 3
        %s402 = scalar_lea.vmem %s4, %s401
        %p404 = scmp.eq.s32.totalorder %s26, 0
        // Predicated region
        $region69: #{tpu_custom_call.1} parent=47 // pred_check
          %p405 = pneg %p404
        $region70: #{tpu_custom_call.1} parent=47 // pred_check_branch
          %407 = sbr.rel (%p405) target = $region72
        $region71: #{tpu_custom_call.1} parent=47 // pred_region
          %v408 = vld [vmem:[#allocation4] sm:$0xff]
          %v409 = vld [vmem:[#allocation4 + $0x8] sm:$0xff]
          %v410 = vld [vmem:[#allocation4 + $0x10] sm:$0xff]
          %v411 = vld [vmem:[#allocation4 + $0x18] sm:$0xff]
          %v412 = vld [vmem:[#allocation4 + $0x20] sm:$0xff]
          %v413 = vld [vmem:[#allocation4 + $0x28] sm:$0xff]
          %v414 = vld [vmem:[#allocation4 + $0x30] sm:$0xff]
          %v415 = vld [vmem:[#allocation4 + $0x38] sm:$0xff]
          %416 = vst [vmem:[#allocation3] sm:$0xff] %v408
          %417 = vst [vmem:[#allocation3 + $0x8] sm:$0xff] %v409
          %418 = vst [vmem:[#allocation3 + $0x10] sm:$0xff] %v410
          %419 = vst [vmem:[#allocation3 + $0x18] sm:$0xff] %v411
          %420 = vst [vmem:[#allocation3 + $0x20] sm:$0xff] %v412
          %421 = vst [vmem:[#allocation3 + $0x28] sm:$0xff] %v413
          %422 = vst [vmem:[#allocation3 + $0x30] sm:$0xff] %v414
          %423 = vst [vmem:[#allocation3 + $0x38] sm:$0xff] %v415
        $region72: #{tpu_custom_call.1} parent=47 // pred_fallthru
          _
        %v424 = vld [vmem:[%s339] sm:$0xff]
        %v425 = vld [vmem:[%s339 + $0x8] sm:$0xf]
        %v426 = vld [vmem:[%s339 + $0xc] sm:$0xff]
        %v427 = vld [vmem:[%s339 + $0x14] sm:$0xf]
        %v428 = vld [vmem:[%s339 + $0x18] sm:$0xff]
        %v429 = vld [vmem:[%s339 + $0x20] sm:$0xf]
        %v430 = vld [vmem:[%s339 + $0x24] sm:$0xff]
        %v431 = vld [vmem:[%s339 + $0x2c] sm:$0xf]
        %v432 = vld [vmem:[%s339 + $0x30] sm:$0xff]
        %v433 = vld [vmem:[%s339 + $0x38] sm:$0xf]
        %v434 = vld [vmem:[%s339 + $0x3c] sm:$0xff]
        %v435 = vld [vmem:[%s339 + $0x44] sm:$0xf]
        %v436 = vld [vmem:[%s339 + $0x48] sm:$0xff]
        %v437 = vld [vmem:[%s339 + $0x50] sm:$0xf]
        %v438 = vld [vmem:[%s339 + $0x54] sm:$0xff]
        %v439 = vld [vmem:[%s339 + $0x5c] sm:$0xf]
        %v440 = vld [vmem:[%s339 + $0x60] sm:$0xff]
        %v441 = vld [vmem:[%s339 + $0x68] sm:$0xf]
        %v442 = vld [vmem:[%s339 + $0x6c] sm:$0xff]
        %v443 = vld [vmem:[%s339 + $0x74] sm:$0xf]
        %v444 = vld [vmem:[%s339 + $0x78] sm:$0xff]
        %v445 = vld [vmem:[%s339 + $0x80] sm:$0xf]
        %v446 = vld [vmem:[%s339 + $0x84] sm:$0xff]
        %v447 = vld [vmem:[%s339 + $0x8c] sm:$0xf]
        %v448 = vld [vmem:[%s339 + $0x90] sm:$0xff]
        %v449 = vld [vmem:[%s339 + $0x98] sm:$0xf]
        %v450 = vld [vmem:[%s339 + $0x9c] sm:$0xff]
        %v451 = vld [vmem:[%s339 + $0xa4] sm:$0xf]
        %v452 = vld [vmem:[%s339 + $0xa8] sm:$0xff]
        %v453 = vld [vmem:[%s339 + $0xb0] sm:$0xf]
        %v454 = vld [vmem:[%s339 + $0xb4] sm:$0xff]
        %v455 = vld [vmem:[%s339 + $0xbc] sm:$0xf]
        %v456 = vld [vmem:[%s348] sm:$0xff]
        %v457 = vld [vmem:[%s348 + $0x8] sm:$0xf]
        %v458 = vld [vmem:[%s348 + $0xc] sm:$0xff]
        %v459 = vld [vmem:[%s348 + $0x14] sm:$0xf]
        %v460 = vld [vmem:[%s348 + $0x18] sm:$0xff]
        %v461 = vld [vmem:[%s348 + $0x20] sm:$0xf]
        %v462 = vld [vmem:[%s348 + $0x24] sm:$0xff]
        %v463 = vld [vmem:[%s348 + $0x2c] sm:$0xf]
        %v464 = vld [vmem:[%s348 + $0x30] sm:$0xff]
        %v465 = vld [vmem:[%s348 + $0x38] sm:$0xf]
        %v466 = vld [vmem:[%s348 + $0x3c] sm:$0xff]
        %v467 = vld [vmem:[%s348 + $0x44] sm:$0xf]
        %v468 = vld [vmem:[%s348 + $0x48] sm:$0xff]
        %v469 = vld [vmem:[%s348 + $0x50] sm:$0xf]
        %v470 = vld [vmem:[%s348 + $0x54] sm:$0xff]
        %v471 = vld [vmem:[%s348 + $0x5c] sm:$0xf]
        %v472 = vld [vmem:[%s348 + $0x60] sm:$0xff]
        %v473 = vld [vmem:[%s348 + $0x68] sm:$0xf]
        %v474 = vld [vmem:[%s348 + $0x6c] sm:$0xff]
        %v475 = vld [vmem:[%s348 + $0x74] sm:$0xf]
        %v476 = vld [vmem:[%s348 + $0x78] sm:$0xff]
        %v477 = vld [vmem:[%s348 + $0x80] sm:$0xf]
        %v478 = vld [vmem:[%s348 + $0x84] sm:$0xff]
        %v479 = vld [vmem:[%s348 + $0x8c] sm:$0xf]
        %v480 = vld [vmem:[%s348 + $0x90] sm:$0xff]
        %v481 = vld [vmem:[%s348 + $0x98] sm:$0xf]
        %v482 = vld [vmem:[%s348 + $0x9c] sm:$0xff]
        %v483 = vld [vmem:[%s348 + $0xa4] sm:$0xf]
        %v484 = vld [vmem:[%s348 + $0xa8] sm:$0xff]
        %v485 = vld [vmem:[%s348 + $0xb0] sm:$0xf]
        %v486 = vld [vmem:[%s348 + $0xb4] sm:$0xff]
        %v487 = vld [vmem:[%s348 + $0xbc] sm:$0xf]
        %v488 = vld [vmem:[%s357] sm:$0x7]
        %v489 = vld [vmem:[%s402] sm:$0x1]
        %v491 = vlaneseq
        %v492 = vshrl.u32 %v491, 7
        %v493 = vsub.s32 0, %v492
        %v494 = vrot.slane %v489, %v493
        %v496 = vld [vmem:[#allocation3] sm:$0xff]
        %v497 = vld [vmem:[#allocation3 + $0x8] sm:$0xff]
        %v498 = vld [vmem:[#allocation3 + $0x10] sm:$0xff]
        %v499 = vld [vmem:[#allocation3 + $0x18] sm:$0xff]
        %v500 = vld [vmem:[#allocation3 + $0x20] sm:$0xff]
        %v501 = vld [vmem:[#allocation3 + $0x28] sm:$0xff]
        %v502 = vld [vmem:[#allocation3 + $0x30] sm:$0xff]
        %v503 = vld [vmem:[#allocation3 + $0x38] sm:$0xff]
        %v504 = vpack.c.bf16 %v497, %v496
        %v505 = vpack.c.bf16 %v499, %v498
        %v506 = vpack.c.bf16 %v501, %v500
        %v507 = vpack.c.bf16 %v503, %v502
        %v509 = vlaneseq
        %v510 = vshrl.u32 %v509, 7
        %v511 = vsub.s32 0, %v510
        %v512 = vrot.slane %v488, %v511
        %v513 = vlaneseq
        %v514 = vshrl.u32 %v513, 7
        %v515 = vsub.s32 1, %v514
        %v516 = vrot.slane %v488, %v515
        %v517 = vlaneseq
        %v518 = vshrl.u32 %v517, 7
        %v519 = vsub.s32 2, %v518
        %v520 = vrot.slane %v488, %v519
        %v556 = vunpack.c.l.b16 %v424
        %v557 = vunpack.c.h.b16 %v424
        %v558 = vunpack.c.l.b16 %v425
        %v559 = vunpack.c.l.b16 %v426
        %v560 = vunpack.c.h.b16 %v426
        %v561 = vunpack.c.l.b16 %v427
        %v562 = vunpack.c.l.b16 %v428
        %v563 = vunpack.c.h.b16 %v428
        %v564 = vunpack.c.l.b16 %v429
        %v565 = vunpack.c.l.b16 %v430
        %v566 = vunpack.c.h.b16 %v430
        %v567 = vunpack.c.l.b16 %v431
        %v568 = vunpack.c.l.b16 %v432
        %v569 = vunpack.c.h.b16 %v432
        %v570 = vunpack.c.l.b16 %v433
        %v571 = vunpack.c.l.b16 %v434
        %v572 = vunpack.c.h.b16 %v434
        %v573 = vunpack.c.l.b16 %v435
        %v574 = vunpack.c.l.b16 %v436
        %v575 = vunpack.c.h.b16 %v436
        %v576 = vunpack.c.l.b16 %v437
        %v577 = vunpack.c.l.b16 %v438
        %v578 = vunpack.c.h.b16 %v438
        %v579 = vunpack.c.l.b16 %v439
        %v580 = vunpack.c.l.b16 %v440
        %v581 = vunpack.c.h.b16 %v440
        %v582 = vunpack.c.l.b16 %v441
        %v583 = vunpack.c.l.b16 %v442
        %v584 = vunpack.c.h.b16 %v442
        %v585 = vunpack.c.l.b16 %v443
        %v586 = vunpack.c.l.b16 %v444
        %v587 = vunpack.c.h.b16 %v444
        %v588 = vunpack.c.l.b16 %v445
        %v589 = vunpack.c.l.b16 %v446
        %v590 = vunpack.c.h.b16 %v446
        %v591 = vunpack.c.l.b16 %v447
        %v592 = vunpack.c.l.b16 %v448
        %v593 = vunpack.c.h.b16 %v448
        %v594 = vunpack.c.l.b16 %v449
        %v595 = vunpack.c.l.b16 %v450
        %v596 = vunpack.c.h.b16 %v450
        %v597 = vunpack.c.l.b16 %v451
        %v598 = vunpack.c.l.b16 %v452
        %v599 = vunpack.c.h.b16 %v452
        %v600 = vunpack.c.l.b16 %v453
        %v601 = vunpack.c.l.b16 %v454
        %v602 = vunpack.c.h.b16 %v454
        %v603 = vunpack.c.l.b16 %v455
        %v604 = vpack.c.b16 %v559, %v556
        %v605 = vpack.c.b16 %v560, %v557
        %v606 = vpack.c.b16 %v561, %v558
        %v607 = vpack.c.b16 %v565, %v562
        %v608 = vpack.c.b16 %v566, %v563
        %v609 = vpack.c.b16 %v567, %v564
        %v610 = vpack.c.b16 %v571, %v568
        %v611 = vpack.c.b16 %v572, %v569
        %v612 = vpack.c.b16 %v573, %v570
        %v613 = vpack.c.b16 %v577, %v574
        %v614 = vpack.c.b16 %v578, %v575
        %v615 = vpack.c.b16 %v579, %v576
        %v616 = vpack.c.b16 %v583, %v580
        %v617 = vpack.c.b16 %v584, %v581
        %v618 = vpack.c.b16 %v585, %v582
        %v619 = vpack.c.b16 %v589, %v586
        %v620 = vpack.c.b16 %v590, %v587
        %v621 = vpack.c.b16 %v591, %v588
        %v622 = vpack.c.b16 %v595, %v592
        %v623 = vpack.c.b16 %v596, %v593
        %v624 = vpack.c.b16 %v597, %v594
        %v625 = vpack.c.b16 %v601, %v598
        %v626 = vpack.c.b16 %v602, %v599
        %v627 = vpack.c.b16 %v603, %v600
        %652 = vmatprep.subr.bf16.mxu0 %v626
        %653 = vmatpush1.bf16.msra.mxu0 %v625
        %654 = vmatprep.subr.bf16.mxu0 %v623
        %655 = vmatpush1.bf16.msra.mxu0 %v622
        %656 = vmatprep.subr.bf16.mxu0 %v620
        %657 = vmatpush1.bf16.msra.mxu0 %v619
        %658 = vmatprep.subr.bf16.mxu0 %v617
        %659 = vmatpush1.bf16.msra.mxu0 %v616
        %660 = vmatprep.subr.bf16.mxu0 %v614
        %661 = vmatpush1.bf16.msra.mxu0 %v613
        %662 = vmatprep.subr.bf16.mxu0 %v611
        %663 = vmatpush1.bf16.msra.mxu0 %v610
        %664 = vmatprep.subr.bf16.mxu0 %v608
        %665 = vmatpush1.bf16.msra.mxu0 %v607
        %666 = vmatprep.subr.bf16.mxu0 %v605
        %667 = vmatpush1.bf16.msra.mxu0 %v604
        %668 = vmatprep.subr.bf16.mxu0 0
        %669 = vmatpush2.bf16.msra.mxu0 0
        %670 = vmatprep.subr.bf16.mxu0 0
        %671 = vmatpush2.bf16.msra.mxu0 0
        %672 = vmatprep.subr.bf16.mxu0 0
        %673 = vmatpush2.bf16.msra.mxu0 0
        %674 = vmatprep.subr.bf16.mxu0 0
        %675 = vmatpush2.bf16.msra.mxu0 0
        %676 = vmatprep.subr.bf16.mxu0 0
        %677 = vmatpush2.bf16.msra.mxu0 0
        %678 = vmatprep.subr.bf16.mxu0 0
        %679 = vmatpush2.bf16.msra.mxu0 0
        %680 = vmatprep.subr.bf16.mxu0 0
        %681 = vmatpush2.bf16.msra.mxu0 0
        %682 = vmatprep.subr.bf16.mxu0 0
        %683 = vmatpush2.bf16.msra.mxu0 0
        %684 = vmatprep.mubr.bf16.mxu0 0
        %685 = vmatmul.mubr.bf16.gmra.mxu0 %v504
        %v686 = vpop.f32.mrf.mxu0
        %v687 = vadd.f32 %v512, %v686
        %v688 = vpop.f32.mrf.mxu0
        %v689 = vadd.f32 %v516, %v688
        %v690 = vpop.f32.mrf.mxu0
        %v691 = vadd.f32 %v512, %v690
        %v692 = vpop.f32.mrf.mxu0
        %v693 = vadd.f32 %v516, %v692
        %694 = vmatprep.mubr.bf16.mxu0 0
        %695 = vmatmul.mubr.bf16.gmra.mxu0 %v505
        %v696 = vpop.f32.mrf.mxu0
        %v697 = vadd.f32 %v512, %v696
        %v698 = vpop.f32.mrf.mxu0
        %v699 = vadd.f32 %v516, %v698
        %v700 = vpop.f32.mrf.mxu0
        %v701 = vadd.f32 %v512, %v700
        %v702 = vpop.f32.mrf.mxu0
        %v703 = vadd.f32 %v516, %v702
        %704 = vmatprep.mubr.bf16.mxu0 0
        %705 = vmatmul.mubr.bf16.gmra.mxu0 %v506
        %v706 = vpop.f32.mrf.mxu0
        %v707 = vadd.f32 %v512, %v706
        %v708 = vpop.f32.mrf.mxu0
        %v709 = vadd.f32 %v516, %v708
        %v710 = vpop.f32.mrf.mxu0
        %v711 = vadd.f32 %v512, %v710
        %v712 = vpop.f32.mrf.mxu0
        %v713 = vadd.f32 %v516, %v712
        %714 = vmatprep.mubr.bf16.mxu0 0
        %715 = vmatmul.mubr.bf16.gmra.mxu0 %v507
        %v716 = vpop.f32.mrf.mxu0
        %v717 = vadd.f32 %v512, %v716
        %v718 = vpop.f32.mrf.mxu0
        %v719 = vadd.f32 %v516, %v718
        %v720 = vpop.f32.mrf.mxu0
        %v721 = vadd.f32 %v512, %v720
        %v722 = vpop.f32.mrf.mxu0
        %v723 = vadd.f32 %v516, %v722
        %724 = vdwg.mxu0
        %725 = vmatprep.subr.bf16.mxu0 0
        %726 = vmatpush1.bf16.msra.mxu0 %v627
        %727 = vmatprep.subr.bf16.mxu0 0
        %728 = vmatpush1.bf16.msra.mxu0 %v624
        %729 = vmatprep.subr.bf16.mxu0 0
        %730 = vmatpush1.bf16.msra.mxu0 %v621
        %731 = vmatprep.subr.bf16.mxu0 0
        %732 = vmatpush1.bf16.msra.mxu0 %v618
        %733 = vmatprep.subr.bf16.mxu0 0
        %734 = vmatpush1.bf16.msra.mxu0 %v615
        %735 = vmatprep.subr.bf16.mxu0 0
        %736 = vmatpush1.bf16.msra.mxu0 %v612
        %737 = vmatprep.subr.bf16.mxu0 0
        %738 = vmatpush1.bf16.msra.mxu0 %v609
        %739 = vmatprep.subr.bf16.mxu0 0
        %740 = vmatpush1.bf16.msra.mxu0 %v606
        %741 = vmatprep.subr.bf16.mxu0 0
        %742 = vmatpush2.bf16.msra.mxu0 0
        %743 = vmatprep.subr.bf16.mxu0 0
        %744 = vmatpush2.bf16.msra.mxu0 0
        %745 = vmatprep.subr.bf16.mxu0 0
        %746 = vmatpush2.bf16.msra.mxu0 0
        %747 = vmatprep.subr.bf16.mxu0 0
        %748 = vmatpush2.bf16.msra.mxu0 0
        %749 = vmatprep.subr.bf16.mxu0 0
        %750 = vmatpush2.bf16.msra.mxu0 0
        %751 = vmatprep.subr.bf16.mxu0 0
        %752 = vmatpush2.bf16.msra.mxu0 0
        %753 = vmatprep.subr.bf16.mxu0 0
        %754 = vmatpush2.bf16.msra.mxu0 0
        %755 = vmatprep.subr.bf16.mxu0 0
        %756 = vmatpush2.bf16.msra.mxu0 0
        %757 = vmatprep.mubr.bf16.mxu0 0
        %758 = vmatmul.mubr.bf16.gmra.mxu0 %v504
        %v759 = vpop.f32.mrf.mxu0
        %v760 = vadd.f32 %v520, %v759
        %v761 = vpop.f32.mrf.mxu0
        %v762 = vpop.f32.mrf.mxu0
        %v763 = vadd.f32 %v520, %v762
        %v764 = vpop.f32.mrf.mxu0
        %765 = vmatprep.mubr.bf16.mxu0 0
        %766 = vmatmul.mubr.bf16.gmra.mxu0 %v505
        %v767 = vpop.f32.mrf.mxu0
        %v768 = vadd.f32 %v520, %v767
        %v769 = vpop.f32.mrf.mxu0
        %v770 = vpop.f32.mrf.mxu0
        %v771 = vadd.f32 %v520, %v770
        %v772 = vpop.f32.mrf.mxu0
        %773 = vmatprep.mubr.bf16.mxu0 0
        %774 = vmatmul.mubr.bf16.gmra.mxu0 %v506
        %v775 = vpop.f32.mrf.mxu0
        %v776 = vadd.f32 %v520, %v775
        %v777 = vpop.f32.mrf.mxu0
        %v778 = vpop.f32.mrf.mxu0
        %v779 = vadd.f32 %v520, %v778
        %v780 = vpop.f32.mrf.mxu0
        %781 = vmatprep.mubr.bf16.mxu0 0
        %782 = vmatmul.mubr.bf16.gmra.mxu0 %v507
        %v783 = vpop.f32.mrf.mxu0
        %v784 = vadd.f32 %v520, %v783
        %v785 = vpop.f32.mrf.mxu0
        %v786 = vpop.f32.mrf.mxu0
        %v787 = vadd.f32 %v520, %v786
        %v788 = vpop.f32.mrf.mxu0
        %789 = vdwg.mxu0
        %790 = vst [vmem:[#allocation2] sm:$0xff] %v687
        %791 = vst [vmem:[#allocation2 + $0x8] sm:$0xff] %v689
        %792 = vst [vmem:[#allocation2 + $0x10] sm:$0xff] %v760
        %793 = vst [vmem:[#allocation2 + $0x18] sm:$0xff] %v691
        %794 = vst [vmem:[#allocation2 + $0x20] sm:$0xff] %v693
        %795 = vst [vmem:[#allocation2 + $0x28] sm:$0xff] %v763
        %796 = vst [vmem:[#allocation2 + $0x30] sm:$0xff] %v697
        %797 = vst [vmem:[#allocation2 + $0x38] sm:$0xff] %v699
        %798 = vst [vmem:[#allocation2 + $0x40] sm:$0xff] %v768
        %799 = vst [vmem:[#allocation2 + $0x48] sm:$0xff] %v701
        %800 = vst [vmem:[#allocation2 + $0x50] sm:$0xff] %v703
        %801 = vst [vmem:[#allocation2 + $0x58] sm:$0xff] %v771
        %802 = vst [vmem:[#allocation2 + $0x60] sm:$0xff] %v707
        %803 = vst [vmem:[#allocation2 + $0x68] sm:$0xff] %v709
        %804 = vst [vmem:[#allocation2 + $0x70] sm:$0xff] %v776
        %805 = vst [vmem:[#allocation2 + $0x78] sm:$0xff] %v711
        %806 = vst [vmem:[#allocation2 + $0x80] sm:$0xff] %v713
        %807 = vst [vmem:[#allocation2 + $0x88] sm:$0xff] %v779
        %808 = vst [vmem:[#allocation2 + $0x90] sm:$0xff] %v717
        %809 = vst [vmem:[#allocation2 + $0x98] sm:$0xff] %v719
        %810 = vst [vmem:[#allocation2 + $0xa0] sm:$0xff] %v784
        %811 = vst [vmem:[#allocation2 + $0xa8] sm:$0xff] %v721
        %812 = vst [vmem:[#allocation2 + $0xb0] sm:$0xff] %v723
        %813 = vst [vmem:[#allocation2 + $0xb8] sm:$0xff] %v787
        %v814 = vld [vmem:[#allocation2] sm:$0xff]
        %v815 = vld [vmem:[#allocation2 + $0x8] sm:$0xff]
        %v816 = vld [vmem:[#allocation2 + $0x10] sm:$0xff]
        %v817 = vxor.u32 %v814, 2147483648
        %v818 = vmul.f32 %v817, 1.442695
        %v819 = vpow.pop %v818
        %v820 = vadd.f32 %v819, 1.0
        %v821 = vrcp.pop %v820
        %v822 = vmul.f32 1.0, %v821
        %v823 = vxor.u32 %v815, 2147483648
        %v824 = vmul.f32 %v823, 1.442695
        %v825 = vpow.pop %v824
        %v826 = vadd.f32 %v825, 1.0
        %v827 = vrcp.pop %v826
        %v828 = vmul.f32 1.0, %v827
        %v829 = vmul.f32 %v822, %v494
        %v830 = vadd.f32 %v816, %v829
        %v831 = vtanh.pop %v830
        %v832 = vsub.f32 1.0, %v828
        %v833 = vmul.f32 %v832, %v831
        %834 = vst [vmem:[#allocation3] sm:$0xff] %v833
        %s835 = scalar_lea.vmem [#allocation2], 24
        %v836 = vld [vmem:[%s835] sm:$0xff]
        %v837 = vld [vmem:[%s835 + $0x8] sm:$0xff]
        %v838 = vld [vmem:[%s835 + $0x10] sm:$0xff]
        %v839 = vpack.c.bf16 %v833, %v833
        %v872 = vunpack.c.l.b16 %v456
        %v873 = vunpack.c.h.b16 %v456
        %v874 = vunpack.c.l.b16 %v457
        %v875 = vunpack.c.l.b16 %v458
        %v876 = vunpack.c.h.b16 %v458
        %v877 = vunpack.c.l.b16 %v459
        %v878 = vunpack.c.l.b16 %v460
        %v879 = vunpack.c.h.b16 %v460
        %v880 = vunpack.c.l.b16 %v461
        %v881 = vunpack.c.l.b16 %v462
        %v882 = vunpack.c.h.b16 %v462
        %v883 = vunpack.c.l.b16 %v463
        %v884 = vunpack.c.l.b16 %v464
        %v885 = vunpack.c.h.b16 %v464
        %v886 = vunpack.c.l.b16 %v465
        %v887 = vunpack.c.l.b16 %v466
        %v888 = vunpack.c.h.b16 %v466
        %v889 = vunpack.c.l.b16 %v467
        %v890 = vunpack.c.l.b16 %v468
        %v891 = vunpack.c.h.b16 %v468
        %v892 = vunpack.c.l.b16 %v469
        %v893 = vunpack.c.l.b16 %v470
        %v894 = vunpack.c.h.b16 %v470
        %v895 = vunpack.c.l.b16 %v471
        %v896 = vunpack.c.l.b16 %v472
        %v897 = vunpack.c.h.b16 %v472
        %v898 = vunpack.c.l.b16 %v473
        %v899 = vunpack.c.l.b16 %v474
        %v900 = vunpack.c.h.b16 %v474
        %v901 = vunpack.c.l.b16 %v475
        %v902 = vunpack.c.l.b16 %v476
        %v903 = vunpack.c.h.b16 %v476
        %v904 = vunpack.c.l.b16 %v477
        %v905 = vunpack.c.l.b16 %v478
        %v906 = vunpack.c.h.b16 %v478
        %v907 = vunpack.c.l.b16 %v479
        %v908 = vunpack.c.l.b16 %v480
        %v909 = vunpack.c.h.b16 %v480
        %v910 = vunpack.c.l.b16 %v481
        %v911 = vunpack.c.l.b16 %v482
        %v912 = vunpack.c.h.b16 %v482
        %v913 = vunpack.c.l.b16 %v483
        %v914 = vunpack.c.l.b16 %v484
        %v915 = vunpack.c.h.b16 %v484
        %v916 = vunpack.c.l.b16 %v485
        %v917 = vunpack.c.l.b16 %v486
        %v918 = vunpack.c.h.b16 %v486
        %v919 = vunpack.c.l.b16 %v487
        %v920 = vpack.c.b16 %v875, %v872
        %v921 = vpack.c.b16 %v876, %v873
        %v922 = vpack.c.b16 %v877, %v874
        %v923 = vpack.c.b16 %v881, %v878
        %v924 = vpack.c.b16 %v882, %v879
        %v925 = vpack.c.b16 %v883, %v880
        %v926 = vpack.c.b16 %v887, %v884
        %v927 = vpack.c.b16 %v888, %v885
        %v928 = vpack.c.b16 %v889, %v886
        %v929 = vpack.c.b16 %v893, %v890
        %v930 = vpack.c.b16 %v894, %v891
        %v931 = vpack.c.b16 %v895, %v892
        %v932 = vpack.c.b16 %v899, %v896
        %v933 = vpack.c.b16 %v900, %v897
        %v934 = vpack.c.b16 %v901, %v898
        %v935 = vpack.c.b16 %v905, %v902
        %v936 = vpack.c.b16 %v906, %v903
        %v937 = vpack.c.b16 %v907, %v904
        %v938 = vpack.c.b16 %v911, %v908
        %v939 = vpack.c.b16 %v912, %v909
        %v940 = vpack.c.b16 %v913, %v910
        %v941 = vpack.c.b16 %v917, %v914
        %v942 = vpack.c.b16 %v918, %v915
        %v943 = vpack.c.b16 %v919, %v916
        %968 = vmatprep.subr.bf16.mxu0 %v942
        %969 = vmatpush1.bf16.msra.mxu0 %v941
        %970 = vmatprep.subr.bf16.mxu0 %v939
        %971 = vmatpush1.bf16.msra.mxu0 %v938
        %972 = vmatprep.subr.bf16.mxu0 %v936
        %973 = vmatpush1.bf16.msra.mxu0 %v935
        %974 = vmatprep.subr.bf16.mxu0 %v933
        %975 = vmatpush1.bf16.msra.mxu0 %v932
        %976 = vmatprep.subr.bf16.mxu0 %v930
        %977 = vmatpush1.bf16.msra.mxu0 %v929
        %978 = vmatprep.subr.bf16.mxu0 %v927
        %979 = vmatpush1.bf16.msra.mxu0 %v926
        %980 = vmatprep.subr.bf16.mxu0 %v924
        %981 = vmatpush1.bf16.msra.mxu0 %v923
        %982 = vmatprep.subr.bf16.mxu0 %v921
        %983 = vmatpush1.bf16.msra.mxu0 %v920
        %984 = vmatprep.subr.bf16.mxu0 0
        %985 = vmatpush2.bf16.msra.mxu0 0
        %986 = vmatprep.subr.bf16.mxu0 0
        %987 = vmatpush2.bf16.msra.mxu0 0
        %988 = vmatprep.subr.bf16.mxu0 0
        %989 = vmatpush2.bf16.msra.mxu0 0
        %990 = vmatprep.subr.bf16.mxu0 0
        %991 = vmatpush2.bf16.msra.mxu0 0
        %992 = vmatprep.subr.bf16.mxu0 0
        %993 = vmatpush2.bf16.msra.mxu0 0
        %994 = vmatprep.subr.bf16.mxu0 0
        %995 = vmatpush2.bf16.msra.mxu0 0
        %996 = vmatprep.subr.bf16.mxu0 0
        %997 = vmatpush2.bf16.msra.mxu0 0
        %998 = vmatprep.subr.bf16.mxu0 0
        %999 = vmatpush2.bf16.msra.mxu0 0
        %1000 = vmatprep.mubr.bf16.mxu0 0
        %1001 = vmatmul.mubr.bf16.gmra.mxu0 %v839
        %v1002 = vpop.f32.mrf.mxu0
        %v1003 = vadd.f32 0.0, %v1002
        %v1004 = vpop.f32.mrf.mxu0
        %v1005 = vadd.f32 0.0, %v1004
        %v1006 = vpop.f32.mrf.mxu0
        %v1007 = vpop.f32.mrf.mxu0
        %1008 = vdwg.mxu0
        %1009 = vmatprep.subr.bf16.mxu0 0
        %1010 = vmatpush1.bf16.msra.mxu0 %v943
        %1011 = vmatprep.subr.bf16.mxu0 0
        %1012 = vmatpush1.bf16.msra.mxu0 %v940
        %1013 = vmatprep.subr.bf16.mxu0 0
        %1014 = vmatpush1.bf16.msra.mxu0 %v937
        %1015 = vmatprep.subr.bf16.mxu0 0
        %1016 = vmatpush1.bf16.msra.mxu0 %v934
        %1017 = vmatprep.subr.bf16.mxu0 0
        %1018 = vmatpush1.bf16.msra.mxu0 %v931
        %1019 = vmatprep.subr.bf16.mxu0 0
        %1020 = vmatpush1.bf16.msra.mxu0 %v928
        %1021 = vmatprep.subr.bf16.mxu0 0
        %1022 = vmatpush1.bf16.msra.mxu0 %v925
        %1023 = vmatprep.subr.bf16.mxu0 0
        %1024 = vmatpush1.bf16.msra.mxu0 %v922
        %1025 = vmatprep.subr.bf16.mxu0 0
        %1026 = vmatpush2.bf16.msra.mxu0 0
        %1027 = vmatprep.subr.bf16.mxu0 0
        %1028 = vmatpush2.bf16.msra.mxu0 0
        %1029 = vmatprep.subr.bf16.mxu0 0
        %1030 = vmatpush2.bf16.msra.mxu0 0
        %1031 = vmatprep.subr.bf16.mxu0 0
        %1032 = vmatpush2.bf16.msra.mxu0 0
        %1033 = vmatprep.subr.bf16.mxu0 0
        %1034 = vmatpush2.bf16.msra.mxu0 0
        %1035 = vmatprep.subr.bf16.mxu0 0
        %1036 = vmatpush2.bf16.msra.mxu0 0
        %1037 = vmatprep.subr.bf16.mxu0 0
        %1038 = vmatpush2.bf16.msra.mxu0 0
        %1039 = vmatprep.subr.bf16.mxu0 0
        %1040 = vmatpush2.bf16.msra.mxu0 0
        %1041 = vmatprep.mubr.bf16.mxu0 0
        %1042 = vmatmul.mubr.bf16.gmra.mxu0 %v839
        %v1043 = vpop.f32.mrf.mxu0
        %v1044 = vadd.f32 0.0, %v1043
        %v1045 = vpop.f32.mrf.mxu0
        %v1046 = vpop.f32.mrf.mxu0
        %v1047 = vpop.f32.mrf.mxu0
        %1048 = vdwg.mxu0
        %v1049 = vadd.f32 %v836, %v1003
        %v1050 = vxor.u32 %v1049, 2147483648
        %v1051 = vmul.f32 %v1050, 1.442695
        %v1052 = vpow.pop %v1051
        %v1053 = vadd.f32 %v1052, 1.0
        %v1054 = vrcp.pop %v1053
        %v1055 = vmul.f32 1.0, %v1054
        %v1056 = vadd.f32 %v837, %v1005
        %v1057 = vxor.u32 %v1056, 2147483648
        %v1058 = vmul.f32 %v1057, 1.442695
        %v1059 = vpow.pop %v1058
        %v1060 = vadd.f32 %v1059, 1.0
        %v1061 = vrcp.pop %v1060
        %v1062 = vmul.f32 1.0, %v1061
        %v1063 = vadd.f32 %v1044, %v494
        %v1064 = vmul.f32 %v1055, %v1063
        %v1065 = vadd.f32 %v838, %v1064
        %v1066 = vtanh.pop %v1065
        %v1067 = vsub.f32 1.0, %v1062
        %v1068 = vmul.f32 %v1067, %v1066
        %v1069 = vmul.f32 %v1062, %v833
        %v1070 = vadd.f32 %v1068, %v1069
        %s1071 = scalar_lea.vmem [#allocation3], 8
        %1072 = vst [vmem:[%s1071] sm:$0xff] %v1070
        %s1073 = scalar_lea.vmem [#allocation2], 48
        %v1074 = vld [vmem:[%s1073] sm:$0xff]
        %v1075 = vld [vmem:[%s1073 + $0x8] sm:$0xff]
        %v1076 = vld [vmem:[%s1073 + $0x10] sm:$0xff]
        %v1077 = vpack.c.bf16 %v1070, %v1070
        %1078 = vmatprep.subr.bf16.mxu0 %v942
        %1079 = vmatpush1.bf16.msra.mxu0 %v941
        %1080 = vmatprep.subr.bf16.mxu0 %v939
        %1081 = vmatpush1.bf16.msra.mxu0 %v938
        %1082 = vmatprep.subr.bf16.mxu0 %v936
        %1083 = vmatpush1.bf16.msra.mxu0 %v935
        %1084 = vmatprep.subr.bf16.mxu0 %v933
        %1085 = vmatpush1.bf16.msra.mxu0 %v932
        %1086 = vmatprep.subr.bf16.mxu0 %v930
        %1087 = vmatpush1.bf16.msra.mxu0 %v929
        %1088 = vmatprep.subr.bf16.mxu0 %v927
        %1089 = vmatpush1.bf16.msra.mxu0 %v926
        %1090 = vmatprep.subr.bf16.mxu0 %v924
        %1091 = vmatpush1.bf16.msra.mxu0 %v923
        %1092 = vmatprep.subr.bf16.mxu0 %v921
        %1093 = vmatpush1.bf16.msra.mxu0 %v920
        %1094 = vmatprep.subr.bf16.mxu0 0
        %1095 = vmatpush2.bf16.msra.mxu0 0
        %1096 = vmatprep.subr.bf16.mxu0 0
        %1097 = vmatpush2.bf16.msra.mxu0 0
        %1098 = vmatprep.subr.bf16.mxu0 0
        %1099 = vmatpush2.bf16.msra.mxu0 0
        %1100 = vmatprep.subr.bf16.mxu0 0
        %1101 = vmatpush2.bf16.msra.mxu0 0
        %1102 = vmatprep.subr.bf16.mxu0 0
        %1103 = vmatpush2.bf16.msra.mxu0 0
        %1104 = vmatprep.subr.bf16.mxu0 0
        %1105 = vmatpush2.bf16.msra.mxu0 0
        %1106 = vmatprep.subr.bf16.mxu0 0
        %1107 = vmatpush2.bf16.msra.mxu0 0
        %1108 = vmatprep.subr.bf16.mxu0 0
        %1109 = vmatpush2.bf16.msra.mxu0 0
        %1110 = vmatprep.mubr.bf16.mxu0 0
        %1111 = vmatmul.mubr.bf16.gmra.mxu0 %v1077
        %v1112 = vpop.f32.mrf.mxu0
        %v1113 = vadd.f32 0.0, %v1112
        %v1114 = vpop.f32.mrf.mxu0
        %v1115 = vadd.f32 0.0, %v1114
        %v1116 = vpop.f32.mrf.mxu0
        %v1117 = vpop.f32.mrf.mxu0
        %1118 = vdwg.mxu0
        %1119 = vmatprep.subr.bf16.mxu0 0
        %1120 = vmatpush1.bf16.msra.mxu0 %v943
        %1121 = vmatprep.subr.bf16.mxu0 0
        %1122 = vmatpush1.bf16.msra.mxu0 %v940
        %1123 = vmatprep.subr.bf16.mxu0 0
        %1124 = vmatpush1.bf16.msra.mxu0 %v937
        %1125 = vmatprep.subr.bf16.mxu0 0
        %1126 = vmatpush1.bf16.msra.mxu0 %v934
        %1127 = vmatprep.subr.bf16.mxu0 0
        %1128 = vmatpush1.bf16.msra.mxu0 %v931
        %1129 = vmatprep.subr.bf16.mxu0 0
        %1130 = vmatpush1.bf16.msra.mxu0 %v928
        %1131 = vmatprep.subr.bf16.mxu0 0
        %1132 = vmatpush1.bf16.msra.mxu0 %v925
        %1133 = vmatprep.subr.bf16.mxu0 0
        %1134 = vmatpush1.bf16.msra.mxu0 %v922
        %1135 = vmatprep.subr.bf16.mxu0 0
        %1136 = vmatpush2.bf16.msra.mxu0 0
        %1137 = vmatprep.subr.bf16.mxu0 0
        %1138 = vmatpush2.bf16.msra.mxu0 0
        %1139 = vmatprep.subr.bf16.mxu0 0
        %1140 = vmatpush2.bf16.msra.mxu0 0
        %1141 = vmatprep.subr.bf16.mxu0 0
        %1142 = vmatpush2.bf16.msra.mxu0 0
        %1143 = vmatprep.subr.bf16.mxu0 0
        %1144 = vmatpush2.bf16.msra.mxu0 0
        %1145 = vmatprep.subr.bf16.mxu0 0
        %1146 = vmatpush2.bf16.msra.mxu0 0
        %1147 = vmatprep.subr.bf16.mxu0 0
        %1148 = vmatpush2.bf16.msra.mxu0 0
        %1149 = vmatprep.subr.bf16.mxu0 0
        %1150 = vmatpush2.bf16.msra.mxu0 0
        %1151 = vmatprep.mubr.bf16.mxu0 0
        %1152 = vmatmul.mubr.bf16.gmra.mxu0 %v1077
        %v1153 = vpop.f32.mrf.mxu0
        %v1154 = vadd.f32 0.0, %v1153
        %v1155 = vpop.f32.mrf.mxu0
        %v1156 = vpop.f32.mrf.mxu0
        %v1157 = vpop.f32.mrf.mxu0
        %1158 = vdwg.mxu0
        %v1159 = vadd.f32 %v1074, %v1113
        %v1160 = vxor.u32 %v1159, 2147483648
        %v1161 = vmul.f32 %v1160, 1.442695
        %v1162 = vpow.pop %v1161
        %v1163 = vadd.f32 %v1162, 1.0
        %v1164 = vrcp.pop %v1163
        %v1165 = vmul.f32 1.0, %v1164
        %v1166 = vadd.f32 %v1075, %v1115
        %v1167 = vxor.u32 %v1166, 2147483648
        %v1168 = vmul.f32 %v1167, 1.442695
        %v1169 = vpow.pop %v1168
        %v1170 = vadd.f32 %v1169, 1.0
        %v1171 = vrcp.pop %v1170
        %v1172 = vmul.f32 1.0, %v1171
        %v1173 = vadd.f32 %v1154, %v494
        %v1174 = vmul.f32 %v1165, %v1173
        %v1175 = vadd.f32 %v1076, %v1174
        %v1176 = vtanh.pop %v1175
        %v1177 = vsub.f32 1.0, %v1172
        %v1178 = vmul.f32 %v1177, %v1176
        %v1179 = vmul.f32 %v1172, %v1070
        %v1180 = vadd.f32 %v1178, %v1179
        %s1181 = scalar_lea.vmem [#allocation3], 16
        %1182 = vst [vmem:[%s1181] sm:$0xff] %v1180
        %s1183 = scalar_lea.vmem [#allocation2], 72
        %v1184 = vld [vmem:[%s1183] sm:$0xff]
        %v1185 = vld [vmem:[%s1183 + $0x8] sm:$0xff]
        %v1186 = vld [vmem:[%s1183 + $0x10] sm:$0xff]
        %v1187 = vpack.c.bf16 %v1180, %v1180
        %1188 = vmatprep.subr.bf16.mxu0 %v942
        %1189 = vmatpush1.bf16.msra.mxu0 %v941
        %1190 = vmatprep.subr.bf16.mxu0 %v939
        %1191 = vmatpush1.bf16.msra.mxu0 %v938
        %1192 = vmatprep.subr.bf16.mxu0 %v936
        %1193 = vmatpush1.bf16.msra.mxu0 %v935
        %1194 = vmatprep.subr.bf16.mxu0 %v933
        %1195 = vmatpush1.bf16.msra.mxu0 %v932
        %1196 = vmatprep.subr.bf16.mxu0 %v930
        %1197 = vmatpush1.bf16.msra.mxu0 %v929
        %1198 = vmatprep.subr.bf16.mxu0 %v927
        %1199 = vmatpush1.bf16.msra.mxu0 %v926
        %1200 = vmatprep.subr.bf16.mxu0 %v924
        %1201 = vmatpush1.bf16.msra.mxu0 %v923
        %1202 = vmatprep.subr.bf16.mxu0 %v921
        %1203 = vmatpush1.bf16.msra.mxu0 %v920
        %1204 = vmatprep.subr.bf16.mxu0 0
        %1205 = vmatpush2.bf16.msra.mxu0 0
        %1206 = vmatprep.subr.bf16.mxu0 0
        %1207 = vmatpush2.bf16.msra.mxu0 0
        %1208 = vmatprep.subr.bf16.mxu0 0
        %1209 = vmatpush2.bf16.msra.mxu0 0
        %1210 = vmatprep.subr.bf16.mxu0 0
        %1211 = vmatpush2.bf16.msra.mxu0 0
        %1212 = vmatprep.subr.bf16.mxu0 0
        %1213 = vmatpush2.bf16.msra.mxu0 0
        %1214 = vmatprep.subr.bf16.mxu0 0
        %1215 = vmatpush2.bf16.msra.mxu0 0
        %1216 = vmatprep.subr.bf16.mxu0 0
        %1217 = vmatpush2.bf16.msra.mxu0 0
        %1218 = vmatprep.subr.bf16.mxu0 0
        %1219 = vmatpush2.bf16.msra.mxu0 0
        %1220 = vmatprep.mubr.bf16.mxu0 0
        %1221 = vmatmul.mubr.bf16.gmra.mxu0 %v1187
        %v1222 = vpop.f32.mrf.mxu0
        %v1223 = vadd.f32 0.0, %v1222
        %v1224 = vpop.f32.mrf.mxu0
        %v1225 = vadd.f32 0.0, %v1224
        %v1226 = vpop.f32.mrf.mxu0
        %v1227 = vpop.f32.mrf.mxu0
        %1228 = vdwg.mxu0
        %1229 = vmatprep.subr.bf16.mxu0 0
        %1230 = vmatpush1.bf16.msra.mxu0 %v943
        %1231 = vmatprep.subr.bf16.mxu0 0
        %1232 = vmatpush1.bf16.msra.mxu0 %v940
        %1233 = vmatprep.subr.bf16.mxu0 0
        %1234 = vmatpush1.bf16.msra.mxu0 %v937
        %1235 = vmatprep.subr.bf16.mxu0 0
        %1236 = vmatpush1.bf16.msra.mxu0 %v934
        %1237 = vmatprep.subr.bf16.mxu0 0
        %1238 = vmatpush1.bf16.msra.mxu0 %v931
        %1239 = vmatprep.subr.bf16.mxu0 0
        %1240 = vmatpush1.bf16.msra.mxu0 %v928
        %1241 = vmatprep.subr.bf16.mxu0 0
        %1242 = vmatpush1.bf16.msra.mxu0 %v925
        %1243 = vmatprep.subr.bf16.mxu0 0
        %1244 = vmatpush1.bf16.msra.mxu0 %v922
        %1245 = vmatprep.subr.bf16.mxu0 0
        %1246 = vmatpush2.bf16.msra.mxu0 0
        %1247 = vmatprep.subr.bf16.mxu0 0
        %1248 = vmatpush2.bf16.msra.mxu0 0
        %1249 = vmatprep.subr.bf16.mxu0 0
        %1250 = vmatpush2.bf16.msra.mxu0 0
        %1251 = vmatprep.subr.bf16.mxu0 0
        %1252 = vmatpush2.bf16.msra.mxu0 0
        %1253 = vmatprep.subr.bf16.mxu0 0
        %1254 = vmatpush2.bf16.msra.mxu0 0
        %1255 = vmatprep.subr.bf16.mxu0 0
        %1256 = vmatpush2.bf16.msra.mxu0 0
        %1257 = vmatprep.subr.bf16.mxu0 0
        %1258 = vmatpush2.bf16.msra.mxu0 0
        %1259 = vmatprep.subr.bf16.mxu0 0
        %1260 = vmatpush2.bf16.msra.mxu0 0
        %1261 = vmatprep.mubr.bf16.mxu0 0
        %1262 = vmatmul.mubr.bf16.gmra.mxu0 %v1187
        %v1263 = vpop.f32.mrf.mxu0
        %v1264 = vadd.f32 0.0, %v1263
        %v1265 = vpop.f32.mrf.mxu0
        %v1266 = vpop.f32.mrf.mxu0
        %v1267 = vpop.f32.mrf.mxu0
        %1268 = vdwg.mxu0
        %v1269 = vadd.f32 %v1184, %v1223
        %v1270 = vxor.u32 %v1269, 2147483648
        %v1271 = vmul.f32 %v1270, 1.442695
        %v1272 = vpow.pop %v1271
        %v1273 = vadd.f32 %v1272, 1.0
        %v1274 = vrcp.pop %v1273
        %v1275 = vmul.f32 1.0, %v1274
        %v1276 = vadd.f32 %v1185, %v1225
        %v1277 = vxor.u32 %v1276, 2147483648
        %v1278 = vmul.f32 %v1277, 1.442695
        %v1279 = vpow.pop %v1278
        %v1280 = vadd.f32 %v1279, 1.0
        %v1281 = vrcp.pop %v1280
        %v1282 = vmul.f32 1.0, %v1281
        %v1283 = vadd.f32 %v1264, %v494
        %v1284 = vmul.f32 %v1275, %v1283
        %v1285 = vadd.f32 %v1186, %v1284
        %v1286 = vtanh.pop %v1285
        %v1287 = vsub.f32 1.0, %v1282
        %v1288 = vmul.f32 %v1287, %v1286
        %v1289 = vmul.f32 %v1282, %v1180
        %v1290 = vadd.f32 %v1288, %v1289
        %s1291 = scalar_lea.vmem [#allocation3], 24
        %1292 = vst [vmem:[%s1291] sm:$0xff] %v1290
        %s1293 = scalar_lea.vmem [#allocation2], 96
        %v1294 = vld [vmem:[%s1293] sm:$0xff]
        %v1295 = vld [vmem:[%s1293 + $0x8] sm:$0xff]
        %v1296 = vld [vmem:[%s1293 + $0x10] sm:$0xff]
        %v1297 = vpack.c.bf16 %v1290, %v1290
        %1298 = vmatprep.subr.bf16.mxu0 %v942
        %1299 = vmatpush1.bf16.msra.mxu0 %v941
        %1300 = vmatprep.subr.bf16.mxu0 %v939
        %1301 = vmatpush1.bf16.msra.mxu0 %v938
        %1302 = vmatprep.subr.bf16.mxu0 %v936
        %1303 = vmatpush1.bf16.msra.mxu0 %v935
        %1304 = vmatprep.subr.bf16.mxu0 %v933
        %1305 = vmatpush1.bf16.msra.mxu0 %v932
        %1306 = vmatprep.subr.bf16.mxu0 %v930
        %1307 = vmatpush1.bf16.msra.mxu0 %v929
        %1308 = vmatprep.subr.bf16.mxu0 %v927
        %1309 = vmatpush1.bf16.msra.mxu0 %v926
        %1310 = vmatprep.subr.bf16.mxu0 %v924
        %1311 = vmatpush1.bf16.msra.mxu0 %v923
        %1312 = vmatprep.subr.bf16.mxu0 %v921
        %1313 = vmatpush1.bf16.msra.mxu0 %v920
        %1314 = vmatprep.subr.bf16.mxu0 0
        %1315 = vmatpush2.bf16.msra.mxu0 0
        %1316 = vmatprep.subr.bf16.mxu0 0
        %1317 = vmatpush2.bf16.msra.mxu0 0
        %1318 = vmatprep.subr.bf16.mxu0 0
        %1319 = vmatpush2.bf16.msra.mxu0 0
        %1320 = vmatprep.subr.bf16.mxu0 0
        %1321 = vmatpush2.bf16.msra.mxu0 0
        %1322 = vmatprep.subr.bf16.mxu0 0
        %1323 = vmatpush2.bf16.msra.mxu0 0
        %1324 = vmatprep.subr.bf16.mxu0 0
        %1325 = vmatpush2.bf16.msra.mxu0 0
        %1326 = vmatprep.subr.bf16.mxu0 0
        %1327 = vmatpush2.bf16.msra.mxu0 0
        %1328 = vmatprep.subr.bf16.mxu0 0
        %1329 = vmatpush2.bf16.msra.mxu0 0
        %1330 = vmatprep.mubr.bf16.mxu0 0
        %1331 = vmatmul.mubr.bf16.gmra.mxu0 %v1297
        %v1332 = vpop.f32.mrf.mxu0
        %v1333 = vadd.f32 0.0, %v1332
        %v1334 = vpop.f32.mrf.mxu0
        %v1335 = vadd.f32 0.0, %v1334
        %v1336 = vpop.f32.mrf.mxu0
        %v1337 = vpop.f32.mrf.mxu0
        %1338 = vdwg.mxu0
        %1339 = vmatprep.subr.bf16.mxu0 0
        %1340 = vmatpush1.bf16.msra.mxu0 %v943
        %1341 = vmatprep.subr.bf16.mxu0 0
        %1342 = vmatpush1.bf16.msra.mxu0 %v940
        %1343 = vmatprep.subr.bf16.mxu0 0
        %1344 = vmatpush1.bf16.msra.mxu0 %v937
        %1345 = vmatprep.subr.bf16.mxu0 0
        %1346 = vmatpush1.bf16.msra.mxu0 %v934
        %1347 = vmatprep.subr.bf16.mxu0 0
        %1348 = vmatpush1.bf16.msra.mxu0 %v931
        %1349 = vmatprep.subr.bf16.mxu0 0
        %1350 = vmatpush1.bf16.msra.mxu0 %v928
        %1351 = vmatprep.subr.bf16.mxu0 0
        %1352 = vmatpush1.bf16.msra.mxu0 %v925
        %1353 = vmatprep.subr.bf16.mxu0 0
        %1354 = vmatpush1.bf16.msra.mxu0 %v922
        %1355 = vmatprep.subr.bf16.mxu0 0
        %1356 = vmatpush2.bf16.msra.mxu0 0
        %1357 = vmatprep.subr.bf16.mxu0 0
        %1358 = vmatpush2.bf16.msra.mxu0 0
        %1359 = vmatprep.subr.bf16.mxu0 0
        %1360 = vmatpush2.bf16.msra.mxu0 0
        %1361 = vmatprep.subr.bf16.mxu0 0
        %1362 = vmatpush2.bf16.msra.mxu0 0
        %1363 = vmatprep.subr.bf16.mxu0 0
        %1364 = vmatpush2.bf16.msra.mxu0 0
        %1365 = vmatprep.subr.bf16.mxu0 0
        %1366 = vmatpush2.bf16.msra.mxu0 0
        %1367 = vmatprep.subr.bf16.mxu0 0
        %1368 = vmatpush2.bf16.msra.mxu0 0
        %1369 = vmatprep.subr.bf16.mxu0 0
        %1370 = vmatpush2.bf16.msra.mxu0 0
        %1371 = vmatprep.mubr.bf16.mxu0 0
        %1372 = vmatmul.mubr.bf16.gmra.mxu0 %v1297
        %v1373 = vpop.f32.mrf.mxu0
        %v1374 = vadd.f32 0.0, %v1373
        %v1375 = vpop.f32.mrf.mxu0
        %v1376 = vpop.f32.mrf.mxu0
        %v1377 = vpop.f32.mrf.mxu0
        %1378 = vdwg.mxu0
        %v1379 = vadd.f32 %v1294, %v1333
        %v1380 = vxor.u32 %v1379, 2147483648
        %v1381 = vmul.f32 %v1380, 1.442695
        %v1382 = vpow.pop %v1381
        %v1383 = vadd.f32 %v1382, 1.0
        %v1384 = vrcp.pop %v1383
        %v1385 = vmul.f32 1.0, %v1384
        %v1386 = vadd.f32 %v1295, %v1335
        %v1387 = vxor.u32 %v1386, 2147483648
        %v1388 = vmul.f32 %v1387, 1.442695
        %v1389 = vpow.pop %v1388
        %v1390 = vadd.f32 %v1389, 1.0
        %v1391 = vrcp.pop %v1390
        %v1392 = vmul.f32 1.0, %v1391
        %v1393 = vadd.f32 %v1374, %v494
        %v1394 = vmul.f32 %v1385, %v1393
        %v1395 = vadd.f32 %v1296, %v1394
        %v1396 = vtanh.pop %v1395
        %v1397 = vsub.f32 1.0, %v1392
        %v1398 = vmul.f32 %v1397, %v1396
        %v1399 = vmul.f32 %v1392, %v1290
        %v1400 = vadd.f32 %v1398, %v1399
        %s1401 = scalar_lea.vmem [#allocation3], 32
        %1402 = vst [vmem:[%s1401] sm:$0xff] %v1400
        %s1403 = scalar_lea.vmem [#allocation2], 120
        %v1404 = vld [vmem:[%s1403] sm:$0xff]
        %v1405 = vld [vmem:[%s1403 + $0x8] sm:$0xff]
        %v1406 = vld [vmem:[%s1403 + $0x10] sm:$0xff]
        %v1407 = vpack.c.bf16 %v1400, %v1400
        %1408 = vmatprep.subr.bf16.mxu0 %v942
        %1409 = vmatpush1.bf16.msra.mxu0 %v941
        %1410 = vmatprep.subr.bf16.mxu0 %v939
        %1411 = vmatpush1.bf16.msra.mxu0 %v938
        %1412 = vmatprep.subr.bf16.mxu0 %v936
        %1413 = vmatpush1.bf16.msra.mxu0 %v935
        %1414 = vmatprep.subr.bf16.mxu0 %v933
        %1415 = vmatpush1.bf16.msra.mxu0 %v932
        %1416 = vmatprep.subr.bf16.mxu0 %v930
        %1417 = vmatpush1.bf16.msra.mxu0 %v929
        %1418 = vmatprep.subr.bf16.mxu0 %v927
        %1419 = vmatpush1.bf16.msra.mxu0 %v926
        %1420 = vmatprep.subr.bf16.mxu0 %v924
        %1421 = vmatpush1.bf16.msra.mxu0 %v923
        %1422 = vmatprep.subr.bf16.mxu0 %v921
        %1423 = vmatpush1.bf16.msra.mxu0 %v920
        %1424 = vmatprep.subr.bf16.mxu0 0
        %1425 = vmatpush2.bf16.msra.mxu0 0
        %1426 = vmatprep.subr.bf16.mxu0 0
        %1427 = vmatpush2.bf16.msra.mxu0 0
        %1428 = vmatprep.subr.bf16.mxu0 0
        %1429 = vmatpush2.bf16.msra.mxu0 0
        %1430 = vmatprep.subr.bf16.mxu0 0
        %1431 = vmatpush2.bf16.msra.mxu0 0
        %1432 = vmatprep.subr.bf16.mxu0 0
        %1433 = vmatpush2.bf16.msra.mxu0 0
        %1434 = vmatprep.subr.bf16.mxu0 0
        %1435 = vmatpush2.bf16.msra.mxu0 0
        %1436 = vmatprep.subr.bf16.mxu0 0
        %1437 = vmatpush2.bf16.msra.mxu0 0
        %1438 = vmatprep.subr.bf16.mxu0 0
        %1439 = vmatpush2.bf16.msra.mxu0 0
        %1440 = vmatprep.mubr.bf16.mxu0 0
        %1441 = vmatmul.mubr.bf16.gmra.mxu0 %v1407
        %v1442 = vpop.f32.mrf.mxu0
        %v1443 = vadd.f32 0.0, %v1442
        %v1444 = vpop.f32.mrf.mxu0
        %v1445 = vadd.f32 0.0, %v1444
        %v1446 = vpop.f32.mrf.mxu0
        %v1447 = vpop.f32.mrf.mxu0
        %1448 = vdwg.mxu0
        %1449 = vmatprep.subr.bf16.mxu0 0
        %1450 = vmatpush1.bf16.msra.mxu0 %v943
        %1451 = vmatprep.subr.bf16.mxu0 0
        %1452 = vmatpush1.bf16.msra.mxu0 %v940
        %1453 = vmatprep.subr.bf16.mxu0 0
        %1454 = vmatpush1.bf16.msra.mxu0 %v937
        %1455 = vmatprep.subr.bf16.mxu0 0
        %1456 = vmatpush1.bf16.msra.mxu0 %v934
        %1457 = vmatprep.subr.bf16.mxu0 0
        %1458 = vmatpush1.bf16.msra.mxu0 %v931
        %1459 = vmatprep.subr.bf16.mxu0 0
        %1460 = vmatpush1.bf16.msra.mxu0 %v928
        %1461 = vmatprep.subr.bf16.mxu0 0
        %1462 = vmatpush1.bf16.msra.mxu0 %v925
        %1463 = vmatprep.subr.bf16.mxu0 0
        %1464 = vmatpush1.bf16.msra.mxu0 %v922
        %1465 = vmatprep.subr.bf16.mxu0 0
        %1466 = vmatpush2.bf16.msra.mxu0 0
        %1467 = vmatprep.subr.bf16.mxu0 0
        %1468 = vmatpush2.bf16.msra.mxu0 0
        %1469 = vmatprep.subr.bf16.mxu0 0
        %1470 = vmatpush2.bf16.msra.mxu0 0
        %1471 = vmatprep.subr.bf16.mxu0 0
        %1472 = vmatpush2.bf16.msra.mxu0 0
        %1473 = vmatprep.subr.bf16.mxu0 0
        %1474 = vmatpush2.bf16.msra.mxu0 0
        %1475 = vmatprep.subr.bf16.mxu0 0
        %1476 = vmatpush2.bf16.msra.mxu0 0
        %1477 = vmatprep.subr.bf16.mxu0 0
        %1478 = vmatpush2.bf16.msra.mxu0 0
        %1479 = vmatprep.subr.bf16.mxu0 0
        %1480 = vmatpush2.bf16.msra.mxu0 0
        %1481 = vmatprep.mubr.bf16.mxu0 0
        %1482 = vmatmul.mubr.bf16.gmra.mxu0 %v1407
        %v1483 = vpop.f32.mrf.mxu0
        %v1484 = vadd.f32 0.0, %v1483
        %v1485 = vpop.f32.mrf.mxu0
        %v1486 = vpop.f32.mrf.mxu0
        %v1487 = vpop.f32.mrf.mxu0
        %1488 = vdwg.mxu0
        %v1489 = vadd.f32 %v1404, %v1443
        %v1490 = vxor.u32 %v1489, 2147483648
        %v1491 = vmul.f32 %v1490, 1.442695
        %v1492 = vpow.pop %v1491
        %v1493 = vadd.f32 %v1492, 1.0
        %v1494 = vrcp.pop %v1493
        %v1495 = vmul.f32 1.0, %v1494
        %v1496 = vadd.f32 %v1405, %v1445
        %v1497 = vxor.u32 %v1496, 2147483648
        %v1498 = vmul.f32 %v1497, 1.442695
        %v1499 = vpow.pop %v1498
        %v1500 = vadd.f32 %v1499, 1.0
        %v1501 = vrcp.pop %v1500
        %v1502 = vmul.f32 1.0, %v1501
        %v1503 = vadd.f32 %v1484, %v494
        %v1504 = vmul.f32 %v1495, %v1503
        %v1505 = vadd.f32 %v1406, %v1504
        %v1506 = vtanh.pop %v1505
        %v1507 = vsub.f32 1.0, %v1502
        %v1508 = vmul.f32 %v1507, %v1506
        %v1509 = vmul.f32 %v1502, %v1400
        %v1510 = vadd.f32 %v1508, %v1509
        %s1511 = scalar_lea.vmem [#allocation3], 40
        %1512 = vst [vmem:[%s1511] sm:$0xff] %v1510
        %s1513 = scalar_lea.vmem [#allocation2], 144
        %v1514 = vld [vmem:[%s1513] sm:$0xff]
        %v1515 = vld [vmem:[%s1513 + $0x8] sm:$0xff]
        %v1516 = vld [vmem:[%s1513 + $0x10] sm:$0xff]
        %v1517 = vpack.c.bf16 %v1510, %v1510
        %1518 = vmatprep.subr.bf16.mxu0 %v942
        %1519 = vmatpush1.bf16.msra.mxu0 %v941
        %1520 = vmatprep.subr.bf16.mxu0 %v939
        %1521 = vmatpush1.bf16.msra.mxu0 %v938
        %1522 = vmatprep.subr.bf16.mxu0 %v936
        %1523 = vmatpush1.bf16.msra.mxu0 %v935
        %1524 = vmatprep.subr.bf16.mxu0 %v933
        %1525 = vmatpush1.bf16.msra.mxu0 %v932
        %1526 = vmatprep.subr.bf16.mxu0 %v930
        %1527 = vmatpush1.bf16.msra.mxu0 %v929
        %1528 = vmatprep.subr.bf16.mxu0 %v927
        %1529 = vmatpush1.bf16.msra.mxu0 %v926
        %1530 = vmatprep.subr.bf16.mxu0 %v924
        %1531 = vmatpush1.bf16.msra.mxu0 %v923
        %1532 = vmatprep.subr.bf16.mxu0 %v921
        %1533 = vmatpush1.bf16.msra.mxu0 %v920
        %1534 = vmatprep.subr.bf16.mxu0 0
        %1535 = vmatpush2.bf16.msra.mxu0 0
        %1536 = vmatprep.subr.bf16.mxu0 0
        %1537 = vmatpush2.bf16.msra.mxu0 0
        %1538 = vmatprep.subr.bf16.mxu0 0
        %1539 = vmatpush2.bf16.msra.mxu0 0
        %1540 = vmatprep.subr.bf16.mxu0 0
        %1541 = vmatpush2.bf16.msra.mxu0 0
        %1542 = vmatprep.subr.bf16.mxu0 0
        %1543 = vmatpush2.bf16.msra.mxu0 0
        %1544 = vmatprep.subr.bf16.mxu0 0
        %1545 = vmatpush2.bf16.msra.mxu0 0
        %1546 = vmatprep.subr.bf16.mxu0 0
        %1547 = vmatpush2.bf16.msra.mxu0 0
        %1548 = vmatprep.subr.bf16.mxu0 0
        %1549 = vmatpush2.bf16.msra.mxu0 0
        %1550 = vmatprep.mubr.bf16.mxu0 0
        %1551 = vmatmul.mubr.bf16.gmra.mxu0 %v1517
        %v1552 = vpop.f32.mrf.mxu0
        %v1553 = vadd.f32 0.0, %v1552
        %v1554 = vpop.f32.mrf.mxu0
        %v1555 = vadd.f32 0.0, %v1554
        %v1556 = vpop.f32.mrf.mxu0
        %v1557 = vpop.f32.mrf.mxu0
        %1558 = vdwg.mxu0
        %1559 = vmatprep.subr.bf16.mxu0 0
        %1560 = vmatpush1.bf16.msra.mxu0 %v943
        %1561 = vmatprep.subr.bf16.mxu0 0
        %1562 = vmatpush1.bf16.msra.mxu0 %v940
        %1563 = vmatprep.subr.bf16.mxu0 0
        %1564 = vmatpush1.bf16.msra.mxu0 %v937
        %1565 = vmatprep.subr.bf16.mxu0 0
        %1566 = vmatpush1.bf16.msra.mxu0 %v934
        %1567 = vmatprep.subr.bf16.mxu0 0
        %1568 = vmatpush1.bf16.msra.mxu0 %v931
        %1569 = vmatprep.subr.bf16.mxu0 0
        %1570 = vmatpush1.bf16.msra.mxu0 %v928
        %1571 = vmatprep.subr.bf16.mxu0 0
        %1572 = vmatpush1.bf16.msra.mxu0 %v925
        %1573 = vmatprep.subr.bf16.mxu0 0
        %1574 = vmatpush1.bf16.msra.mxu0 %v922
        %1575 = vmatprep.subr.bf16.mxu0 0
        %1576 = vmatpush2.bf16.msra.mxu0 0
        %1577 = vmatprep.subr.bf16.mxu0 0
        %1578 = vmatpush2.bf16.msra.mxu0 0
        %1579 = vmatprep.subr.bf16.mxu0 0
        %1580 = vmatpush2.bf16.msra.mxu0 0
        %1581 = vmatprep.subr.bf16.mxu0 0
        %1582 = vmatpush2.bf16.msra.mxu0 0
        %1583 = vmatprep.subr.bf16.mxu0 0
        %1584 = vmatpush2.bf16.msra.mxu0 0
        %1585 = vmatprep.subr.bf16.mxu0 0
        %1586 = vmatpush2.bf16.msra.mxu0 0
        %1587 = vmatprep.subr.bf16.mxu0 0
        %1588 = vmatpush2.bf16.msra.mxu0 0
        %1589 = vmatprep.subr.bf16.mxu0 0
        %1590 = vmatpush2.bf16.msra.mxu0 0
        %1591 = vmatprep.mubr.bf16.mxu0 0
        %1592 = vmatmul.mubr.bf16.gmra.mxu0 %v1517
        %v1593 = vpop.f32.mrf.mxu0
        %v1594 = vadd.f32 0.0, %v1593
        %v1595 = vpop.f32.mrf.mxu0
        %v1596 = vpop.f32.mrf.mxu0
        %v1597 = vpop.f32.mrf.mxu0
        %1598 = vdwg.mxu0
        %v1599 = vadd.f32 %v1514, %v1553
        %v1600 = vxor.u32 %v1599, 2147483648
        %v1601 = vmul.f32 %v1600, 1.442695
        %v1602 = vpow.pop %v1601
        %v1603 = vadd.f32 %v1602, 1.0
        %v1604 = vrcp.pop %v1603
        %v1605 = vmul.f32 1.0, %v1604
        %v1606 = vadd.f32 %v1515, %v1555
        %v1607 = vxor.u32 %v1606, 2147483648
        %v1608 = vmul.f32 %v1607, 1.442695
        %v1609 = vpow.pop %v1608
        %v1610 = vadd.f32 %v1609, 1.0
        %v1611 = vrcp.pop %v1610
        %v1612 = vmul.f32 1.0, %v1611
        %v1613 = vadd.f32 %v1594, %v494
        %v1614 = vmul.f32 %v1605, %v1613
        %v1615 = vadd.f32 %v1516, %v1614
        %v1616 = vtanh.pop %v1615
        %v1617 = vsub.f32 1.0, %v1612
        %v1618 = vmul.f32 %v1617, %v1616
        %v1619 = vmul.f32 %v1612, %v1510
        %v1620 = vadd.f32 %v1618, %v1619
        %s1621 = scalar_lea.vmem [#allocation3], 48
        %1622 = vst [vmem:[%s1621] sm:$0xff] %v1620
        %s1623 = scalar_lea.vmem [#allocation2], 168
        %v1624 = vld [vmem:[%s1623] sm:$0xff]
        %v1625 = vld [vmem:[%s1623 + $0x8] sm:$0xff]
        %v1626 = vld [vmem:[%s1623 + $0x10] sm:$0xff]
        %v1627 = vpack.c.bf16 %v1620, %v1620
        %1628 = vmatprep.subr.bf16.mxu0 %v942
        %1629 = vmatpush1.bf16.msra.mxu0 %v941
        %1630 = vmatprep.subr.bf16.mxu0 %v939
        %1631 = vmatpush1.bf16.msra.mxu0 %v938
        %1632 = vmatprep.subr.bf16.mxu0 %v936
        %1633 = vmatpush1.bf16.msra.mxu0 %v935
        %1634 = vmatprep.subr.bf16.mxu0 %v933
        %1635 = vmatpush1.bf16.msra.mxu0 %v932
        %1636 = vmatprep.subr.bf16.mxu0 %v930
        %1637 = vmatpush1.bf16.msra.mxu0 %v929
        %1638 = vmatprep.subr.bf16.mxu0 %v927
        %1639 = vmatpush1.bf16.msra.mxu0 %v926
        %1640 = vmatprep.subr.bf16.mxu0 %v924
        %1641 = vmatpush1.bf16.msra.mxu0 %v923
        %1642 = vmatprep.subr.bf16.mxu0 %v921
        %1643 = vmatpush1.bf16.msra.mxu0 %v920
        %1644 = vmatprep.subr.bf16.mxu0 0
        %1645 = vmatpush2.bf16.msra.mxu0 0
        %1646 = vmatprep.subr.bf16.mxu0 0
        %1647 = vmatpush2.bf16.msra.mxu0 0
        %1648 = vmatprep.subr.bf16.mxu0 0
        %1649 = vmatpush2.bf16.msra.mxu0 0
        %1650 = vmatprep.subr.bf16.mxu0 0
        %1651 = vmatpush2.bf16.msra.mxu0 0
        %1652 = vmatprep.subr.bf16.mxu0 0
        %1653 = vmatpush2.bf16.msra.mxu0 0
        %1654 = vmatprep.subr.bf16.mxu0 0
        %1655 = vmatpush2.bf16.msra.mxu0 0
        %1656 = vmatprep.subr.bf16.mxu0 0
        %1657 = vmatpush2.bf16.msra.mxu0 0
        %1658 = vmatprep.subr.bf16.mxu0 0
        %1659 = vmatpush2.bf16.msra.mxu0 0
        %1660 = vmatprep.mubr.bf16.mxu0 0
        %1661 = vmatmul.mubr.bf16.gmra.mxu0 %v1627
        %v1662 = vpop.f32.mrf.mxu0
        %v1663 = vadd.f32 0.0, %v1662
        %v1664 = vpop.f32.mrf.mxu0
        %v1665 = vadd.f32 0.0, %v1664
        %v1666 = vpop.f32.mrf.mxu0
        %v1667 = vpop.f32.mrf.mxu0
        %1668 = vdwg.mxu0
        %1669 = vmatprep.subr.bf16.mxu0 0
        %1670 = vmatpush1.bf16.msra.mxu0 %v943
        %1671 = vmatprep.subr.bf16.mxu0 0
        %1672 = vmatpush1.bf16.msra.mxu0 %v940
        %1673 = vmatprep.subr.bf16.mxu0 0
        %1674 = vmatpush1.bf16.msra.mxu0 %v937
        %1675 = vmatprep.subr.bf16.mxu0 0
        %1676 = vmatpush1.bf16.msra.mxu0 %v934
        %1677 = vmatprep.subr.bf16.mxu0 0
        %1678 = vmatpush1.bf16.msra.mxu0 %v931
        %1679 = vmatprep.subr.bf16.mxu0 0
        %1680 = vmatpush1.bf16.msra.mxu0 %v928
        %1681 = vmatprep.subr.bf16.mxu0 0
        %1682 = vmatpush1.bf16.msra.mxu0 %v925
        %1683 = vmatprep.subr.bf16.mxu0 0
        %1684 = vmatpush1.bf16.msra.mxu0 %v922
        %1685 = vmatprep.subr.bf16.mxu0 0
        %1686 = vmatpush2.bf16.msra.mxu0 0
        %1687 = vmatprep.subr.bf16.mxu0 0
        %1688 = vmatpush2.bf16.msra.mxu0 0
        %1689 = vmatprep.subr.bf16.mxu0 0
        %1690 = vmatpush2.bf16.msra.mxu0 0
        %1691 = vmatprep.subr.bf16.mxu0 0
        %1692 = vmatpush2.bf16.msra.mxu0 0
        %1693 = vmatprep.subr.bf16.mxu0 0
        %1694 = vmatpush2.bf16.msra.mxu0 0
        %1695 = vmatprep.subr.bf16.mxu0 0
        %1696 = vmatpush2.bf16.msra.mxu0 0
        %1697 = vmatprep.subr.bf16.mxu0 0
        %1698 = vmatpush2.bf16.msra.mxu0 0
        %1699 = vmatprep.subr.bf16.mxu0 0
        %1700 = vmatpush2.bf16.msra.mxu0 0
        %1701 = vmatprep.mubr.bf16.mxu0 0
        %1702 = vmatmul.mubr.bf16.gmra.mxu0 %v1627
        %v1703 = vpop.f32.mrf.mxu0
        %v1704 = vadd.f32 0.0, %v1703
        %v1705 = vpop.f32.mrf.mxu0
        %v1706 = vpop.f32.mrf.mxu0
        %v1707 = vpop.f32.mrf.mxu0
        %1708 = vdwg.mxu0
        %v1709 = vadd.f32 %v1624, %v1663
        %v1710 = vxor.u32 %v1709, 2147483648
        %v1711 = vmul.f32 %v1710, 1.442695
        %v1712 = vpow.pop %v1711
        %v1713 = vadd.f32 %v1712, 1.0
        %v1714 = vrcp.pop %v1713
        %v1715 = vmul.f32 1.0, %v1714
        %v1716 = vadd.f32 %v1625, %v1665
        %v1717 = vxor.u32 %v1716, 2147483648
        %v1718 = vmul.f32 %v1717, 1.442695
        %v1719 = vpow.pop %v1718
        %v1720 = vadd.f32 %v1719, 1.0
        %v1721 = vrcp.pop %v1720
        %v1722 = vmul.f32 1.0, %v1721
        %v1723 = vadd.f32 %v1704, %v494
        %v1724 = vmul.f32 %v1715, %v1723
        %v1725 = vadd.f32 %v1626, %v1724
        %v1726 = vtanh.pop %v1725
        %v1727 = vsub.f32 1.0, %v1722
        %v1728 = vmul.f32 %v1727, %v1726
        %v1729 = vmul.f32 %v1722, %v1620
        %v1730 = vadd.f32 %v1728, %v1729
        %s1731 = scalar_lea.vmem [#allocation3], 56
        %1732 = vst [vmem:[%s1731] sm:$0xff] %v1730
        %v1733 = vpack.c.bf16 %v1730, %v1730
        %v1734 = vld [vmem:[#allocation12] sm:$0xf]
        %v1735 = vld [vmem:[#allocation12 + $0x4] sm:$0xf]
        %v1736 = vld [vmem:[#allocation12 + $0x8] sm:$0xf]
        %v1737 = vld [vmem:[#allocation12 + $0xc] sm:$0xf]
        %v1738 = vld [vmem:[#allocation12 + $0x10] sm:$0xf]
        %v1739 = vld [vmem:[#allocation12 + $0x14] sm:$0xf]
        %v1740 = vld [vmem:[#allocation12 + $0x18] sm:$0xf]
        %v1741 = vld [vmem:[#allocation12 + $0x1c] sm:$0xf]
        %v1742 = vld [vmem:[#allocation12 + $0x20] sm:$0xf]
        %v1743 = vld [vmem:[#allocation12 + $0x24] sm:$0xf]
        %v1744 = vld [vmem:[#allocation12 + $0x28] sm:$0xf]
        %v1745 = vld [vmem:[#allocation12 + $0x2c] sm:$0xf]
        %v1746 = vld [vmem:[#allocation12 + $0x30] sm:$0xf]
        %v1747 = vld [vmem:[#allocation12 + $0x34] sm:$0xf]
        %v1748 = vld [vmem:[#allocation12 + $0x38] sm:$0xf]
        %v1749 = vld [vmem:[#allocation12 + $0x3c] sm:$0xf]
        %v1750 = vld [vmem:[%s6] sm:$0x1]
        %v1752 = vlaneseq
        %v1753 = vshrl.u32 %v1752, 7
        %v1754 = vsub.s32 0, %v1753
        %v1755 = vrot.slane %v1750, %v1754
        %v1773 = vunpack.c.l.b16 %v1734
        %v1774 = vunpack.c.l.b16 %v1735
        %v1775 = vunpack.c.l.b16 %v1736
        %v1776 = vunpack.c.l.b16 %v1737
        %v1777 = vunpack.c.l.b16 %v1738
        %v1778 = vunpack.c.l.b16 %v1739
        %v1779 = vunpack.c.l.b16 %v1740
        %v1780 = vunpack.c.l.b16 %v1741
        %v1781 = vunpack.c.l.b16 %v1742
        %v1782 = vunpack.c.l.b16 %v1743
        %v1783 = vunpack.c.l.b16 %v1744
        %v1784 = vunpack.c.l.b16 %v1745
        %v1785 = vunpack.c.l.b16 %v1746
        %v1786 = vunpack.c.l.b16 %v1747
        %v1787 = vunpack.c.l.b16 %v1748
        %v1788 = vunpack.c.l.b16 %v1749
        %v1789 = vpack.c.b16 %v1774, %v1773
        %v1790 = vpack.c.b16 %v1776, %v1775
        %v1791 = vpack.c.b16 %v1778, %v1777
        %v1792 = vpack.c.b16 %v1780, %v1779
        %v1793 = vpack.c.b16 %v1782, %v1781
        %v1794 = vpack.c.b16 %v1784, %v1783
        %v1795 = vpack.c.b16 %v1786, %v1785
        %v1796 = vpack.c.b16 %v1788, %v1787
        %1805 = vmatprep.subr.bf16.mxu0 0
        %1806 = vmatpush1.bf16.msra.mxu0 %v1796
        %1807 = vmatprep.subr.bf16.mxu0 0
        %1808 = vmatpush1.bf16.msra.mxu0 %v1795
        %1809 = vmatprep.subr.bf16.mxu0 0
        %1810 = vmatpush1.bf16.msra.mxu0 %v1794
        %1811 = vmatprep.subr.bf16.mxu0 0
        %1812 = vmatpush1.bf16.msra.mxu0 %v1793
        %1813 = vmatprep.subr.bf16.mxu0 0
        %1814 = vmatpush1.bf16.msra.mxu0 %v1792
        %1815 = vmatprep.subr.bf16.mxu0 0
        %1816 = vmatpush1.bf16.msra.mxu0 %v1791
        %1817 = vmatprep.subr.bf16.mxu0 0
        %1818 = vmatpush1.bf16.msra.mxu0 %v1790
        %1819 = vmatprep.subr.bf16.mxu0 0
        %1820 = vmatpush1.bf16.msra.mxu0 %v1789
        %1821 = vmatprep.subr.bf16.mxu0 0
        %1822 = vmatpush2.bf16.msra.mxu0 0
        %1823 = vmatprep.subr.bf16.mxu0 0
        %1824 = vmatpush2.bf16.msra.mxu0 0
        %1825 = vmatprep.subr.bf16.mxu0 0
        %1826 = vmatpush2.bf16.msra.mxu0 0
        %1827 = vmatprep.subr.bf16.mxu0 0
        %1828 = vmatpush2.bf16.msra.mxu0 0
        %1829 = vmatprep.subr.bf16.mxu0 0
        %1830 = vmatpush2.bf16.msra.mxu0 0
        %1831 = vmatprep.subr.bf16.mxu0 0
        %1832 = vmatpush2.bf16.msra.mxu0 0
        %1833 = vmatprep.subr.bf16.mxu0 0
        %1834 = vmatpush2.bf16.msra.mxu0 0
        %1835 = vmatprep.subr.bf16.mxu0 0
        %1836 = vmatpush2.bf16.msra.mxu0 0
        %1837 = vmatprep.mubr.bf16.mxu0 0
        %1838 = vmatmul.mubr.bf16.gmra.mxu0 %v1733
        %v1839 = vpop.f32.mrf.mxu0
        %v1840 = vadd.f32 %v1755, %v1839
        %v1841 = vpop.f32.mrf.mxu0
        %v1842 = vpop.f32.mrf.mxu0
        %v1843 = vpop.f32.mrf.mxu0
        %1844 = vdwg.mxu0
        %1845 = vst [vmem:[#allocation13] sm:$0xff] %v1840
        // Predicated region
        $region73: #{tpu_custom_call.1} parent=47 // pred_check
          %p1846 = pneg %p206
        $region74: #{tpu_custom_call.1} parent=47 // pred_check_branch
          %1848 = sbr.rel (%p1846) target = $region76
        $region75: #{tpu_custom_call.1} parent=47 // pred_region
          %s1850 = ssub.s32 128, 128
          %1851 = vsyncadd [#allocation6], %s1850
          %s1853 = sshll.u32 [#allocation13], 4
          %s1854 = int_to_ptr.vmem [resolvable:$true] %s1853
          %1856 = dma.vmem_to_hbm [thread:$0]  %s1854, 128, %s7, [#allocation6]
        $region76: #{tpu_custom_call.1} parent=47 // pred_fallthru
          _
        // Predicated region
        $region77: #{tpu_custom_call.1} parent=47 // pred_check
          %p1857 = pneg %p206
        $region78: #{tpu_custom_call.1} parent=47 // pred_check_branch
          %1859 = sbr.rel (%p1857) target = $region80
        $region79: #{tpu_custom_call.1} parent=47 // pred_region
          %1860 = dma.done [#allocation6], 128
        $region80: #{tpu_custom_call.1} parent=47 // pred_fallthru
          _
      $region48: #{tpu_custom_call.1} parent=5 // pred_fallthru
        _
      %p1861 = scmp.le.s32.totalorder 2, %s21
      // Predicated region
      $region81: #{tpu_custom_call.1} parent=5 // pred_check
        %p1862 = pneg %p1861
      $region82: #{tpu_custom_call.1} parent=5 // pred_check_branch
        %1864 = sbr.rel (%p1862) target = $region84
      $region83: #{tpu_custom_call.1} parent=5 // pred_region
        %s1865 = ssub.s32 %s21, 2
      $region84: #{tpu_custom_call.1} parent=5 // pred_fallthru
        _
    $region6: #{tpu_custom_call.1} parent=1 // loop_footer
      %s25 = sadd.s32 1, %s21
    $region7: #{tpu_custom_call.1} parent=1 // loop_footer_branch
      %20 = sbr.rel target = $region3
    $region8: #{tpu_custom_call.1} parent=1 // loop_exit
      _
    %1866 = vsyncpa [#allocation5], 1
    %s1867 = scalar_lea.sflag [#allocation5], 1
    %1868 = vsyncpa %s1867, 1
    %1869 = vsyncpa [#allocation8], 1
    %s1870 = scalar_lea.sflag [#allocation8], 1
    %1871 = vsyncpa %s1870, 1
    %1872 = vsyncpa [#allocation11], 1
    %s1873 = scalar_lea.sflag [#allocation11], 1
    %1874 = vsyncpa %s1873, 1
    %1875 = vsyncpa [#allocation6], 1
    %s1876 = scalar_lea.sflag [#allocation6], 1
    %1877 = vsyncpa %s1876, 1

</llo_original>
